<compile_context>
chip_gen: v7x
topology: tpu7x:2x2x1
jax: 0.10.0
libtpu: 0.0.40
codegen_flags: <defaults>
</compile_context>

<pallas_src>
import jax
import jax.numpy as jnp
from jax import lax
from jax.experimental import pallas as pl
from jax.experimental.pallas import tpu as pltpu


def _tied_lm_kernel(tok_ref,                       # scalar-prefetch: [Np] int32 token ids (SMEM)
                    enc_hbm,                       # [V, E] tied weight, HBM (gather source)
                    wh_ref, bh_ref,                # [E, H], [1, H]   (VMEM resident)
                    wdec_ref, bdec_ref,            # [TV, E], [1, TV] (streamed per V tile)
                    hid_ref, logp_ref,             # outputs: [TN, H], [TN, TV]
                    emb_buf, h_buf, m_buf, l_buf,  # VMEM scratch
                    gsem):                         # DMA semaphore for the row gather
    i = pl.program_id(0)      # row-tile index (parallel)
    p = pl.program_id(1)      # pass: 0 = softmax stats, 1 = write log-probs
    j = pl.program_id(2)      # vocab-tile index
    tn = h_buf.shape[0]

    # --- once per row tile: gather embeddings, compute hidden, init softmax state ---
    @pl.when(jnp.logical_and(p == 0, j == 0))
    def _():
        row0 = i * tn

        def _issue(r, c):
            tok = tok_ref[row0 + r]
            pltpu.make_async_copy(enc_hbm.at[tok], emb_buf.at[r], gsem.at[0]).start()
            return c

        lax.fori_loop(0, tn, _issue, 0)

        def _drain(r, c):
            # same-shape descriptor; only sem/size matter for the wait
            pltpu.make_async_copy(enc_hbm.at[0], emb_buf.at[r], gsem.at[0]).wait()
            return c

        lax.fori_loop(0, tn, _drain, 0)

        # base_model hot path: hidden = tanh(emb @ W_h + b_h)   (f32 accumulate)
        h = jnp.tanh(
            jnp.dot(emb_buf[...], wh_ref[...], preferred_element_type=jnp.float32)
            + bh_ref[...]
        )
        h_buf[...] = h
        hid_ref[...] = h.astype(hid_ref.dtype)

        m_buf[...] = jnp.full_like(m_buf, -jnp.inf)
        l_buf[...] = jnp.zeros_like(l_buf)

    # --- tied decoder matmul for this vocab tile: logits = h @ W_enc[tile]^T + b ---
    # bf16 MXU inputs, f32 accumulate; contraction on E of both operands (RHS "transposed").
    h_bf = h_buf[...].astype(jnp.bfloat16)
    w_bf = wdec_ref[...].astype(jnp.bfloat16)
    logits = lax.dot_general(
        h_bf, w_bf, (((1,), (1,)), ((), ())),
        preferred_element_type=jnp.float32,
    ) + bdec_ref[...]

    @pl.when(p == 0)
    def _():
        # online running max / running sum across vocab tiles
        m_prev = m_buf[...]
        m_new = jnp.maximum(m_prev, jnp.max(logits, axis=-1, keepdims=True))
        l_buf[...] = (
            l_buf[...] * jnp.exp(m_prev - m_new)
            + jnp.sum(jnp.exp(logits - m_new), axis=-1, keepdims=True)
        )
        m_buf[...] = m_new

    @pl.when(p == 1)
    def _():
        # second pass: recompute logits tile and write normalized log-probs.
        # (pass-0 visits of this output block write back stale data that pass 1
        #  overwrites; safe for >= 2 vocab tiles, which the wrapper asserts.)
        lse = m_buf[...] + jnp.log(l_buf[...])
        logp_ref[...] = (logits - lse).astype(logp_ref.dtype)


def tied_lm_forward(tokens, enc_weight, w_h, b_h, b_dec, *, tn=128, tv=256,
                    out_dtype=jnp.float32):
    """tokens: [B, T] int; enc_weight: [V, E]; w_h: [E, H]; b_h: [H]; b_dec: [V].
    Weight tying: decoder.weight = encoder.weight (so H must equal E)."""
    B, T = tokens.shape
    V, E = enc_weight.shape
    H = w_h.shape[1]
    assert H == E, "weight tying requires hidden size == embedding size"
    assert tn % 8 == 0 and tv % 128 == 0, "tiles must be sublane/lane aligned"
    assert V % tv == 0 and V // tv >= 2, \
        "need >=2 vocab tiles for the two-pass log-softmax"

    N = B * T
    tokens_flat = tokens.reshape(N).astype(jnp.int32)
    n_pad = (-N) % tn
    if n_pad:
        tokens_flat = jnp.concatenate(
            [tokens_flat, jnp.zeros((n_pad,), jnp.int32)])
    Np = N + n_pad

    b_h2 = b_h.reshape(1, H).astype(jnp.float32)
    b_dec2 = b_dec.reshape(1, V).astype(jnp.float32)

    grid = (Np // tn, 2, V // tv)

    hid, logp = pl.pallas_call(
        _tied_lm_kernel,
        out_shape=(
            jax.ShapeDtypeStruct((Np, H), out_dtype),
            jax.ShapeDtypeStruct((Np, V), out_dtype),
        ),
        grid_spec=pltpu.PrefetchScalarGridSpec(
            num_scalar_prefetch=1,
            grid=grid,
            in_specs=[
                pl.BlockSpec(memory_space=pl.ANY),                    # enc_weight (HBM, gather src)
                pl.BlockSpec((E, H), lambda i, p, j, tok: (0, 0)),    # W_h (resident)
                pl.BlockSpec((1, H), lambda i, p, j, tok: (0, 0)),    # b_h (resident)
                pl.BlockSpec((tv, E), lambda i, p, j, tok: (j, 0)),   # tied decoder weight tile
                pl.BlockSpec((1, tv), lambda i, p, j, tok: (0, j)),   # b_dec tile
            ],
            out_specs=[
                pl.BlockSpec((tn, H), lambda i, p, j, tok: (i, 0)),   # hidden
                pl.BlockSpec((tn, tv), lambda i, p, j, tok: (i, j)),  # log-probs
            ],
            scratch_shapes=[
                pltpu.VMEM((tn, E), jnp.float32),   # gathered embeddings
                pltpu.VMEM((tn, H), jnp.float32),   # hidden (reused across V tiles / passes)
                pltpu.VMEM((tn, 1), jnp.float32),   # running max
                pltpu.VMEM((tn, 1), jnp.float32),   # running sum
                pltpu.SemaphoreType.DMA((1,)),      # gather semaphore
            ],
        ),
        compiler_params=pltpu.CompilerParams(
            dimension_semantics=("parallel", "arbitrary", "arbitrary"),
            vmem_limit_bytes=32 * 1024 * 1024,
        ),
    )(tokens_flat, enc_weight, w_h, b_h2, enc_weight, b_dec2)

    # mimic patch_result(bm_result, tm_result, extras)
    return {
        "output": hid[:N].reshape(B, T, H),
        "log_probs": logp[:N].reshape(B, T, V),
    }


if __name__ == "__main__":
    # small but lane-dense shapes consistent with the forward:
    # vocab=512, emb=hidden=128, batch=4, seq=64  (N=256 rows -> 2 row tiles, 2 vocab tiles)
    B, T, V, E = 4, 64, 512, 128
    H = E  # tying requires decoder.weight == encoder.weight

    key = jax.random.PRNGKey(0)
    k_tok, k_enc, k_wh, k_bh, k_bd = jax.random.split(key, 5)
    tokens = jax.random.randint(k_tok, (B, T), 0, V, dtype=jnp.int32)
    enc_weight = jax.random.normal(k_enc, (V, E), dtype=jnp.float32) * 0.1
    w_h = jax.random.normal(k_wh, (E, H), dtype=jnp.float32) * 0.1
    b_h = jax.random.normal(k_bh, (H,), dtype=jnp.float32) * 0.01
    b_dec = jax.random.normal(k_bd, (V,), dtype=jnp.float32) * 0.01

    out = tied_lm_forward(tokens, enc_weight, w_h, b_h, b_dec)
    jax.block_until_ready(out)

    # sanity check against a pure-JAX reference of the same tied forward pass
    emb_ref = jnp.take(enc_weight, tokens.reshape(-1), axis=0)
    h_ref = jnp.tanh(emb_ref @ w_h + b_h)
    logits_ref = h_ref @ enc_weight.T + b_dec
    logp_ref = jax.nn.log_softmax(logits_ref, axis=-1)

    assert jnp.allclose(out["output"].reshape(-1, H), h_ref, atol=1e-2, rtol=1e-2)
    assert jnp.allclose(out["log_probs"].reshape(-1, V), logp_ref, atol=1e-2, rtol=1e-2)

    print("KERNEL_OK")
</pallas_src>

<mosaic_0001>
module attributes {stable_mosaic.version = 11 : i64} {
  func.func @_tied_lm_kernel(%arg0: i32, %arg1: i32, %arg2: i32, %arg3: memref<256xi32, #tpu.memory_space<smem>>, %arg4: memref<512x128xf32, #tpu.memory_space<any>>, %arg5: memref<128x128xf32, #tpu.memory_space<vmem>>, %arg6: memref<1x128xf32, #tpu.memory_space<vmem>>, %arg7: memref<256x128xf32, #tpu.memory_space<vmem>>, %arg8: memref<1x256xf32, #tpu.memory_space<vmem>>, %arg9: memref<128x128xf32, #tpu.memory_space<vmem>>, %arg10: memref<128x256xf32, #tpu.memory_space<vmem>>, %arg11: memref<128x128xf32, #tpu.memory_space<vmem>>, %arg12: memref<128x128xf32, #tpu.memory_space<vmem>>, %arg13: memref<128x1xf32, #tpu.memory_space<vmem>>, %arg14: memref<128x1xf32, #tpu.memory_space<vmem>>, %arg15: memref<1x!tpu.dma_semaphore, #tpu.memory_space<semaphore_mem>>) attributes {dimension_semantics = [#tpu.dimension_semantics<parallel>, #tpu.dimension_semantics<arbitrary>, #tpu.dimension_semantics<arbitrary>], iteration_bounds = array<i64: 2, 2, 2>, scalar_prefetch = 1 : i64, scratch_operands = 5 : i64, tpu.core_type = #tpu.core_type<tc>, window_params = [{}, {pipeline_mode = #tpu.pipeline_mode<synchronous>, transform_indices = @transform_1, window_bounds = array<i64: 128, 128>}, {pipeline_mode = #tpu.pipeline_mode<synchronous>, transform_indices = @transform_2, window_bounds = array<i64: 1, 128>}, {transform_indices = @transform_3, window_bounds = array<i64: 256, 128>}, {transform_indices = @transform_4, window_bounds = array<i64: 1, 256>}, {transform_indices = @transform_5, window_bounds = array<i64: 128, 128>}, {transform_indices = @transform_6, window_bounds = array<i64: 128, 256>}]} {
    %c0_i32 = arith.constant 0 : i32
    %0 = arith.cmpi eq, %arg1, %c0_i32 : i32
    %c0_i32_0 = arith.constant 0 : i32
    %1 = arith.cmpi eq, %arg2, %c0_i32_0 : i32
    %2 = arith.andi %0, %1 : i1
    %3 = arith.extui %2 : i1 to i32
    %c0_i32_1 = arith.constant 0 : i32
    %4 = arith.cmpi ne, %3, %c0_i32_1 : i32
    scf.if %4 {
      %c128_i32 = arith.constant 128 : i32
      %19 = arith.muli %arg0, %c128_i32 : i32
      %c0_i32_10 = arith.constant 0 : i32
      %c128_i32_11 = arith.constant 128 : i32
      %20 = arith.addi %c0_i32_10, %c128_i32_11 : i32
      %c1_i32_12 = arith.constant 1 : i32
      scf.for %arg16 = %c0_i32_10 to %20 step %c1_i32_12  : i32 {
        %35 = arith.addi %19, %arg16 : i32
        %36 = arith.index_cast %35 : i32 to index
        %37 = memref.load %arg3[%36] : memref<256xi32, #tpu.memory_space<smem>>
        %c0_i32_35 = arith.constant 0 : i32
        %c0_i32_36 = arith.constant 0 : i32
        %38 = tpu.memref_slice %arg4[%37, %c0_i32_36] : memref<512x128xf32, #tpu.memory_space<any>> -> memref<1x128xf32, #tpu.memory_space<any>>
        %39 = tpu.memref_squeeze %38 : memref<1x128xf32, #tpu.memory_space<any>> -> memref<128xf32, #tpu.memory_space<any>>
        %c0_i32_37 = arith.constant 0 : i32
        %40 = tpu.memref_slice %arg11[%arg16, %c0_i32_37] : memref<128x128xf32, #tpu.memory_space<vmem>> -> memref<1x128xf32, #tpu.memory_space<vmem>>
        %41 = tpu.memref_squeeze %40 : memref<1x128xf32, #tpu.memory_space<vmem>> -> memref<128xf32, #tpu.memory_space<vmem>>
        %42 = tpu.memref_slice %arg15[%c0_i32_35] : memref<1x!tpu.dma_semaphore, #tpu.memory_space<semaphore_mem>> -> memref<1x!tpu.dma_semaphore, #tpu.memory_space<semaphore_mem>>
        %43 = tpu.memref_squeeze %42 : memref<1x!tpu.dma_semaphore, #tpu.memory_space<semaphore_mem>> -> memref<!tpu.dma_semaphore, #tpu.memory_space<semaphore_mem>>
        tpu.enqueue_dma source(%39 : memref<128xf32, #tpu.memory_space<any>>) target(%41 : memref<128xf32, #tpu.memory_space<vmem>>) target_semaphore(%43 : memref<!tpu.dma_semaphore, #tpu.memory_space<semaphore_mem>>)
      }
      %c128_i32_13 = arith.constant 128 : i32
      %c0_i32_14 = arith.constant 0 : i32
      %c128_i32_15 = arith.constant 128 : i32
      %21 = arith.addi %c0_i32_14, %c128_i32_15 : i32
      %c1_i32_16 = arith.constant 1 : i32
      scf.for %arg16 = %c0_i32_14 to %21 step %c1_i32_16  : i32 {
        %c0_i32_35 = arith.constant 0 : i32
        %c0_i32_36 = arith.constant 0 : i32
        %c0_i32_37 = arith.constant 0 : i32
        %35 = tpu.memref_slice %arg4[%c0_i32_35, %c0_i32_37] : memref<512x128xf32, #tpu.memory_space<any>> -> memref<1x128xf32, #tpu.memory_space<any>>
        %36 = tpu.memref_squeeze %35 : memref<1x128xf32, #tpu.memory_space<any>> -> memref<128xf32, #tpu.memory_space<any>>
        %c0_i32_38 = arith.constant 0 : i32
        %37 = tpu.memref_slice %arg11[%arg16, %c0_i32_38] : memref<128x128xf32, #tpu.memory_space<vmem>> -> memref<1x128xf32, #tpu.memory_space<vmem>>
        %38 = tpu.memref_squeeze %37 : memref<1x128xf32, #tpu.memory_space<vmem>> -> memref<128xf32, #tpu.memory_space<vmem>>
        %39 = tpu.memref_slice %arg15[%c0_i32_36] : memref<1x!tpu.dma_semaphore, #tpu.memory_space<semaphore_mem>> -> memref<1x!tpu.dma_semaphore, #tpu.memory_space<semaphore_mem>>
        %40 = tpu.memref_squeeze %39 : memref<1x!tpu.dma_semaphore, #tpu.memory_space<semaphore_mem>> -> memref<!tpu.dma_semaphore, #tpu.memory_space<semaphore_mem>>
        tpu.wait_dma2 semaphore(%40 : memref<!tpu.dma_semaphore, #tpu.memory_space<semaphore_mem>>) src(%36 : memref<128xf32, #tpu.memory_space<any>>) dst(%38 : memref<128xf32, #tpu.memory_space<vmem>>)
      }
      %c128_i32_17 = arith.constant 128 : i32
      %c0_18 = arith.constant 0 : index
      %c0_19 = arith.constant 0 : index
      %22 = vector.load %arg11[%c0_18, %c0_19] : memref<128x128xf32, #tpu.memory_space<vmem>>, vector<128x128xf32>
      %c0_20 = arith.constant 0 : index
      %c0_21 = arith.constant 0 : index
      %23 = vector.load %arg5[%c0_20, %c0_21] : memref<128x128xf32, #tpu.memory_space<vmem>>, vector<128x128xf32>
      %cst_22 = arith.constant dense<0.000000e+00> : vector<128x128xf32>
      %24 = tpu.matmul %22, %23, %cst_22 {dimension_numbers = #tpu.dot_dimension_numbers<[1], [0], [0], [1], [0, 0, 1, 1], [], []>} : vector<128x128xf32>, vector<128x128xf32>, vector<128x128xf32> -> vector<128x128xf32>
      %c0_23 = arith.constant 0 : index
      %c0_24 = arith.constant 0 : index
      %25 = vector.load %arg6[%c0_23, %c0_24] : memref<1x128xf32, #tpu.memory_space<vmem>>, vector<1x128xf32>
      %26 = vector.broadcast %25 : vector<1x128xf32> to vector<128x128xf32>
      %27 = arith.addf %24, %26 : vector<128x128xf32>
      %28 = math.tanh %27 : vector<128x128xf32>
      %c0_25 = arith.constant 0 : index
      %c0_26 = arith.constant 0 : index
      %29 = vector.load %arg12[%c0_25, %c0_26] : memref<128x128xf32, #tpu.memory_space<vmem>>, vector<128x128xf32>
      tpu.vector_store %arg12[%c0_25, %c0_26], %28 {strides = array<i32>} : memref<128x128xf32, #tpu.memory_space<vmem>>, vector<128x128xf32>,
      %c0_27 = arith.constant 0 : index
      %c0_28 = arith.constant 0 : index
      %30 = vector.load %arg9[%c0_27, %c0_28] : memref<128x128xf32, #tpu.memory_space<vmem>>, vector<128x128xf32>
      tpu.vector_store %arg9[%c0_27, %c0_28], %28 {strides = array<i32>} : memref<128x128xf32, #tpu.memory_space<vmem>>, vector<128x128xf32>,
      %cst_29 = arith.constant 0xFF800000 : f32
      %31 = vector.broadcast %cst_29 : f32 to vector<128x1xf32>
      %c0_30 = arith.constant 0 : index
      %c0_31 = arith.constant 0 : index
      %32 = vector.load %arg13[%c0_30, %c0_31] : memref<128x1xf32, #tpu.memory_space<vmem>>, vector<128x1xf32>
      tpu.vector_store %arg13[%c0_30, %c0_31], %31 {strides = array<i32>} : memref<128x1xf32, #tpu.memory_space<vmem>>, vector<128x1xf32>,
      %cst_32 = arith.constant 0.000000e+00 : f32
      %33 = vector.broadcast %cst_32 : f32 to vector<128x1xf32>
      %c0_33 = arith.constant 0 : index
      %c0_34 = arith.constant 0 : index
      %34 = vector.load %arg14[%c0_33, %c0_34] : memref<128x1xf32, #tpu.memory_space<vmem>>, vector<128x1xf32>
      tpu.vector_store %arg14[%c0_33, %c0_34], %33 {strides = array<i32>} : memref<128x1xf32, #tpu.memory_space<vmem>>, vector<128x1xf32>,
    } else {
    }
    %c0 = arith.constant 0 : index
    %c0_2 = arith.constant 0 : index
    %5 = vector.load %arg12[%c0, %c0_2] : memref<128x128xf32, #tpu.memory_space<vmem>>, vector<128x128xf32>
    %6 = arith.truncf %5 : vector<128x128xf32> to vector<128x128xbf16>
    %c0_3 = arith.constant 0 : index
    %c0_4 = arith.constant 0 : index
    %7 = vector.load %arg7[%c0_3, %c0_4] : memref<256x128xf32, #tpu.memory_space<vmem>>, vector<256x128xf32>
    %8 = arith.truncf %7 : vector<256x128xf32> to vector<256x128xbf16>
    %cst = arith.constant dense<0.000000e+00> : vector<128x256xf32>
    %9 = tpu.matmul %6, %8, %cst {dimension_numbers = #tpu.dot_dimension_numbers<[1], [1], [0], [0], [0, 0, 1, 0], [], []>} : vector<128x128xbf16>, vector<256x128xbf16>, vector<128x256xf32> -> vector<128x256xf32>
    %c0_5 = arith.constant 0 : index
    %c0_6 = arith.constant 0 : index
    %10 = vector.load %arg8[%c0_5, %c0_6] : memref<1x256xf32, #tpu.memory_space<vmem>>, vector<1x256xf32>
    %11 = vector.broadcast %10 : vector<1x256xf32> to vector<128x256xf32>
    %12 = arith.addf %9, %11 : vector<128x256xf32>
    %c0_i32_7 = arith.constant 0 : i32
    %13 = arith.cmpi eq, %arg1, %c0_i32_7 : i32
    %14 = arith.extui %13 : i1 to i32
    %c0_i32_8 = arith.constant 0 : i32
    %15 = arith.cmpi ne, %14, %c0_i32_8 : i32
    scf.if %15 {
      %c0_10 = arith.constant 0 : index
      %c0_11 = arith.constant 0 : index
      %19 = vector.load %arg13[%c0_10, %c0_11] : memref<128x1xf32, #tpu.memory_space<vmem>>, vector<128x1xf32>
      %cst_12 = arith.constant dense<0xFF800000> : vector<128xf32>
      %20 = vector.multi_reduction <maximumf>, %12, %cst_12 [1] : vector<128x256xf32> to vector<128xf32>
      %21 = vector.shape_cast %20 : vector<128xf32> to vector<128x1xf32>
      %22 = arith.maximumf %19, %21 : vector<128x1xf32>
      %c0_13 = arith.constant 0 : index
      %c0_14 = arith.constant 0 : index
      %23 = vector.load %arg14[%c0_13, %c0_14] : memref<128x1xf32, #tpu.memory_space<vmem>>, vector<128x1xf32>
      %24 = arith.subf %19, %22 : vector<128x1xf32>
      %25 = math.exp %24 : vector<128x1xf32>
      %26 = arith.mulf %23, %25 : vector<128x1xf32>
      %27 = vector.broadcast %22 : vector<128x1xf32> to vector<128x256xf32>
      %28 = arith.subf %12, %27 : vector<128x256xf32>
      %29 = math.exp %28 : vector<128x256xf32>
      %cst_15 = arith.constant dense<0.000000e+00> : vector<128xf32>
      %30 = vector.multi_reduction <add>, %29, %cst_15 [1] : vector<128x256xf32> to vector<128xf32>
      %31 = vector.shape_cast %30 : vector<128xf32> to vector<128x1xf32>
      %32 = arith.addf %26, %31 : vector<128x1xf32>
      %c0_16 = arith.constant 0 : index
      %c0_17 = arith.constant 0 : index
      %33 = vector.load %arg14[%c0_16, %c0_17] : memref<128x1xf32, #tpu.memory_space<vmem>>, vector<128x1xf32>
      tpu.vector_store %arg14[%c0_16, %c0_17], %32 {strides = array<i32>} : memref<128x1xf32, #tpu.memory_space<vmem>>, vector<128x1xf32>,
      %c0_18 = arith.constant 0 : index
      %c0_19 = arith.constant 0 : index
      %34 = vector.load %arg13[%c0_18, %c0_19] : memref<128x1xf32, #tpu.memory_space<vmem>>, vector<128x1xf32>
      tpu.vector_store %arg13[%c0_18, %c0_19], %22 {strides = array<i32>} : memref<128x1xf32, #tpu.memory_space<vmem>>, vector<128x1xf32>,
    } else {
    }
    %c1_i32 = arith.constant 1 : i32
    %16 = arith.cmpi eq, %arg1, %c1_i32 : i32
    %17 = arith.extui %16 : i1 to i32
    %c0_i32_9 = arith.constant 0 : i32
    %18 = arith.cmpi ne, %17, %c0_i32_9 : i32
    scf.if %18 {
      %c0_10 = arith.constant 0 : index
      %c0_11 = arith.constant 0 : index
      %19 = vector.load %arg13[%c0_10, %c0_11] : memref<128x1xf32, #tpu.memory_space<vmem>>, vector<128x1xf32>
      %c0_12 = arith.constant 0 : index
      %c0_13 = arith.constant 0 : index
      %20 = vector.load %arg14[%c0_12, %c0_13] : memref<128x1xf32, #tpu.memory_space<vmem>>, vector<128x1xf32>
      %21 = math.log %20 : vector<128x1xf32>
      %22 = arith.addf %19, %21 : vector<128x1xf32>
      %23 = vector.broadcast %22 : vector<128x1xf32> to vector<128x256xf32>
      %24 = arith.subf %12, %23 : vector<128x256xf32>
      %c0_14 = arith.constant 0 : index
      %c0_15 = arith.constant 0 : index
      %25 = vector.load %arg10[%c0_14, %c0_15] : memref<128x256xf32, #tpu.memory_space<vmem>>, vector<128x256xf32>
      tpu.vector_store %arg10[%c0_14, %c0_15], %24 {strides = array<i32>} : memref<128x256xf32, #tpu.memory_space<vmem>>, vector<128x256xf32>,
    } else {
    }
    return
  }
  func.func @transform_1(%arg0: i32, %arg1: i32, %arg2: i32, %arg3: memref<256xi32, #tpu.memory_space<smem>>) -> (i32, i32) {
    %c0_i32 = arith.constant 0 : i32
    %c0_i32_0 = arith.constant 0 : i32
    %c0_i32_1 = arith.constant 0 : i32
    return %c0_i32, %c0_i32_0 : i32, i32
  }
  func.func @transform_2(%arg0: i32, %arg1: i32, %arg2: i32, %arg3: memref<256xi32, #tpu.memory_space<smem>>) -> (i32, i32) {
    %c0_i32 = arith.constant 0 : i32
    %c0_i32_0 = arith.constant 0 : i32
    %c0_i32_1 = arith.constant 0 : i32
    return %c0_i32, %c0_i32_0 : i32, i32
  }
  func.func @transform_3(%arg0: i32, %arg1: i32, %arg2: i32, %arg3: memref<256xi32, #tpu.memory_space<smem>>) -> (i32, i32) {
    %c0_i32 = arith.constant 0 : i32
    %c0_i32_0 = arith.constant 0 : i32
    return %arg2, %c0_i32 : i32, i32
  }
  func.func @transform_4(%arg0: i32, %arg1: i32, %arg2: i32, %arg3: memref<256xi32, #tpu.memory_space<smem>>) -> (i32, i32) {
    %c0_i32 = arith.constant 0 : i32
    %c0_i32_0 = arith.constant 0 : i32
    return %c0_i32, %arg2 : i32, i32
  }
  func.func @transform_5(%arg0: i32, %arg1: i32, %arg2: i32, %arg3: memref<256xi32, #tpu.memory_space<smem>>) -> (i32, i32) {
    %c0_i32 = arith.constant 0 : i32
    %c0_i32_0 = arith.constant 0 : i32
    return %arg0, %c0_i32 : i32, i32
  }
  func.func @transform_6(%arg0: i32, %arg1: i32, %arg2: i32, %arg3: memref<256xi32, #tpu.memory_space<smem>>) -> (i32, i32) {
    %c0_i32 = arith.constant 0 : i32
    return %arg0, %arg2 : i32, i32
  }
}

</mosaic_0001>

<llo_original>
// kernel: tpu_custom_call.1
$region0: #{tpu_custom_call.1}
  #allocation0 [shape = 'u32[]', space=smem, size = 0x4, offset = 0x4, fixed_abs, tag = 'smem constant byte address 0x4 - core index']
  #allocation1 [shape = 'u32[144,128]{1,0:T(1,128)}', space=vmem, size = 0x12000, scoped, tag = 'internal scratch']
  #allocation2 [shape = 'f32[128,128]{1,0:T(8,128)}', space=vmem, size = 0x10000, scoped, tag = 'scratch operand']
  #allocation3 [shape = 'f32[128,128]{1,0:T(8,128)}', space=vmem, size = 0x10000, scoped, tag = 'scratch operand']
  #allocation4 [shape = 'f32[128,1]{1,0:T(8,128)}', space=vmem, size = 0x10000, scoped, tag = 'scratch operand']
  #allocation5 [shape = 'f32[128,1]{1,0:T(8,128)}', space=vmem, size = 0x10000, scoped, tag = 'scratch operand']
  #allocation6 [shape = 's32[1]{0}', space=sflag, size = 0x4, scoped, tag = 'scratch operand']
  #allocation7 [shape = 's32[1]{0}', space=sflag, size = 0x4, scoped, tag = 'scoped memory for tpu_custom_call.1']
  #allocation8 [shape = 'u8[1024]{0}', space=smem, size = 0x400, scoped, tag = 'prefetched SMEM operand 0']
  #allocation17 [shape = 's32[]', space=sflag, size = 0x4, offset = 0, fixed_abs, tag = 'sflag constant byte address 0x0 - dummy sync flag']
  #allocation18 [shape = 's32[]', space=sflag, size = 0x4, offset = 0, fixed_abs, tag = 'sflag constant byte address 0x0 - dummy sync flag']
  #allocation19 [shape = 'u32[]', space=smem, size = 0x4, offset = 0x44, fixed_abs, tag = 'smem constant byte address 0x44 - assertion arg 0']
  #allocation20 [shape = 'u32[]', space=smem, size = 0x4, offset = 0x48, fixed_abs, tag = 'smem constant byte address 0x48 - assertion arg 1']
  %s0 = inlined_call_operand.hbm [shape: s32[256], index: 0, kind: input, shape index: {}]
  %s1 = inlined_call_operand.hbm [shape: f32[512,128], index: 1, kind: input, shape index: {}]
  %s2 = inlined_call_operand.hbm [shape: f32[128,128], index: 2, kind: input, shape index: {}]
  %s3 = inlined_call_operand.vmem [shape: f32[1,128], index: 3, kind: input, shape index: {}]
  %s4 = inlined_call_operand.hbm [shape: f32[512,128], index: 4, kind: input, shape index: {}]
  %s5 = inlined_call_operand.vmem [shape: f32[1,512], index: 5, kind: input, shape index: {}]
  %s6 = inlined_call_operand.hbm [shape: f32[256,128], index: 6, kind: output, shape index: {0}]
  %s7 = inlined_call_operand.hbm [shape: f32[256,512], index: 7, kind: output, shape index: {1}]
  %8 = xla_tuple %s6, %s7
  %s9 = sld [smem:[#allocation0]]
  $region95: #{tpu_custom_call.1} parent=0
    _
  %s11 = ssub.s32 1, %s9
  %s12 = scalar_select 0, %s11, %s9
  %14 = dma.hbm_to_smem %s0, 32, [#allocation8], [#allocation7]
  %15 = dma.done [#allocation7], 32
  %16 = sfence
  $region1: #{tpu_custom_call.1} parent=0
    #allocation9 [shape = 'u8[65536]{0}', space=vmem, size = 0x10000, scoped, tag = 'input window, operand 2, single buffered']
    #allocation10 [shape = 's32[2]{0}', space=sflag, size = 0x8, scoped, tag = 'scoped memory for tpu_custom_call.1']
    #allocation11 [shape = 's32[2]{0}', space=sflag, size = 0x8, scoped, tag = 'scoped memory for tpu_custom_call.1']
    #allocation12 [shape = 'u8[262144]{0}', space=vmem, size = 0x40000, scoped, tag = 'input window, operand 4']
    #allocation13 [shape = 's32[2]{0}', space=sflag, size = 0x8, scoped, tag = 'scoped memory for tpu_custom_call.1']
    #allocation14 [shape = 'u8[131072]{0}', space=vmem, size = 0x20000, scoped, tag = 'output window, operand 0']
    #allocation15 [shape = 'u8[262144]{0}', space=vmem, size = 0x40000, scoped, tag = 'output window, operand 1']
    #allocation16 [shape = 's32[2]{0}', space=sflag, size = 0x8, scoped, tag = 'scoped memory for tpu_custom_call.1']
    %17 = vsyncpa [#allocation10], 0
    %18 = vsyncpa [#allocation13], 0
    %s19 = scalar_lea.sflag [#allocation13], 1
    %20 = vsyncpa %s19, 0
    %21 = vsyncpa [#allocation11], 0
    %s22 = scalar_lea.sflag [#allocation11], 1
    %23 = vsyncpa %s22, 0
    %24 = vsyncpa [#allocation16], 0
    %s25 = scalar_lea.sflag [#allocation16], 1
    %26 = vsyncpa %s25, 0
    loop: start=0, step=1, limit=10
    $region2: #{tpu_custom_call.1} parent=1 // loop_pre_header
      _
    $region3: #{tpu_custom_call.1} parent=1 // loop_header
      %s28 = sphi 0, %s32
      %p29 = scmp.ge.s32.totalorder %s28, 10
      %s35 = sphi 0, %s54
      %s36 = sphi 0, %s50
      %s37 = sphi 0, %s46
      %s38 = sphi 0, %s35
      %s39 = sphi 0, %s36
      %s40 = sphi 0, %s37
      %s41 = sphi 0, %s38
      %s42 = sphi 0, %s39
      %s43 = sphi 0, %s40
      %s55 = sphi 0, %s55
      %s57 = sphi 0, %s55
      %s58 = sphi 0, %s57
      %s72 = sphi 0, %s58
      %s76 = sphi 0, %s76
      %s78 = sphi 0, %s76
      %s79 = sphi 0, %s78
      %s93 = sphi 0, %s79
      %s99 = sphi 0, %s101
      %s102 = sphi 0, %s99
      %s103 = sphi 0, %s102
      %s119 = sphi 0, %s103
      %s125 = sphi 0, %s127
      %s128 = sphi 0, %s125
      %s129 = sphi 0, %s128
      %s145 = sphi 0, %s129
      %s151 = sphi 0, %s153
      %s154 = sphi 0, %s151
      %s155 = sphi 0, %s154
      %s171 = sphi 0, %s155
      %s179 = sphi 0, %s181
      %s182 = sphi 0, %s179
      %s183 = sphi 0, %s182
      %s199 = sphi 0, %s183
    $region4: #{tpu_custom_call.1} parent=1 // loop_header_branch
      %31 = sbr.rel (%p29) target = $region8
    $region5: #{tpu_custom_call.1} parent=1 // loop_body
      %s33 = ssub.s32 %s28, 1
      %s34 = ssub.s32 %s28, 2
      %s44 = sadd.s32 1, %s37
      %p45 = scmp.ge.s32.totalorder %s44, 2
      %s46 = scalar_select %p45, 0, %s44
      %s47 = sadd.s32 1, %s36
      %s48 = scalar_select %p45, %s47, %s36
      %p49 = scmp.ge.s32.totalorder %s48, 2
      %s50 = scalar_select %p49, 0, %s48
      %s51 = sadd.s32 1, %s35
      %s52 = scalar_select %p49, %s51, %s35
      %p53 = scmp.ge.s32.totalorder %s52, 2
      %s54 = scalar_select %p53, 0, %s52
      %s56 = sadd.s32 %s55, 1
      %p59 = scmp.eq.s32.totalorder %s28, 7
      %p60 = scmp.ne.s32.totalorder %s55, %s57
      %p61 = scmp.eq.s32.totalorder %s28, 0
      %p62 = por %p60, %p61
      %p63 = scmp.ne.s32.totalorder %s55, %s57
      %p64 = scmp.eq.s32.totalorder %s33, 7
      %p65 = por %p63, %p64
      %p66 = scmp.ne.s32.totalorder %s57, %s58
      %p67 = scmp.eq.s32.totalorder %s33, 0
      %p68 = por %p66, %p67
      %p69 = scmp.ne.s32.totalorder %s57, %s58
      %p70 = scmp.eq.s32.totalorder %s34, 7
      %p71 = por %p69, %p70
      %p73 = scmp.ne.s32.totalorder %s58, %s72
      %p74 = scmp.eq.s32.totalorder %s34, 0
      %p75 = por %p73, %p74
      %s77 = sadd.s32 %s76, 1
      %p80 = scmp.eq.s32.totalorder %s28, 7
      %p81 = scmp.ne.s32.totalorder %s76, %s78
      %p82 = scmp.eq.s32.totalorder %s28, 0
      %p83 = por %p81, %p82
      %p84 = scmp.ne.s32.totalorder %s76, %s78
      %p85 = scmp.eq.s32.totalorder %s33, 7
      %p86 = por %p84, %p85
      %p87 = scmp.ne.s32.totalorder %s78, %s79
      %p88 = scmp.eq.s32.totalorder %s33, 0
      %p89 = por %p87, %p88
      %p90 = scmp.ne.s32.totalorder %s78, %s79
      %p91 = scmp.eq.s32.totalorder %s34, 7
      %p92 = por %p90, %p91
      %p94 = scmp.ne.s32.totalorder %s79, %s93
      %p95 = scmp.eq.s32.totalorder %s34, 0
      %p96 = por %p94, %p95
      %s97 = ssub.s32 %s37, %s46
      %p98 = scmp.eq.s32.totalorder %s97, 0
      %s100 = sadd.s32 %s99, 1
      %s101 = scalar_select %p98, %s99, %s100
      %p104 = pneg %p98
      %p105 = scmp.eq.s32.totalorder %s28, 7
      %p106 = por %p104, %p105
      %p107 = scmp.ne.s32.totalorder %s99, %s102
      %p108 = scmp.eq.s32.totalorder %s28, 0
      %p109 = por %p107, %p108
      %p110 = scmp.ne.s32.totalorder %s99, %s102
      %p111 = scmp.eq.s32.totalorder %s33, 7
      %p112 = por %p110, %p111
      %p113 = scmp.ne.s32.totalorder %s102, %s103
      %p114 = scmp.eq.s32.totalorder %s33, 0
      %p115 = por %p113, %p114
      %p116 = scmp.ne.s32.totalorder %s102, %s103
      %p117 = scmp.eq.s32.totalorder %s34, 7
      %p118 = por %p116, %p117
      %p120 = scmp.ne.s32.totalorder %s103, %s119
      %p121 = scmp.eq.s32.totalorder %s34, 0
      %p122 = por %p120, %p121
      %s123 = ssub.s32 %s37, %s46
      %p124 = scmp.eq.s32.totalorder %s123, 0
      %s126 = sadd.s32 %s125, 1
      %s127 = scalar_select %p124, %s125, %s126
      %p130 = pneg %p124
      %p131 = scmp.eq.s32.totalorder %s28, 7
      %p132 = por %p130, %p131
      %p133 = scmp.ne.s32.totalorder %s125, %s128
      %p134 = scmp.eq.s32.totalorder %s28, 0
      %p135 = por %p133, %p134
      %p136 = scmp.ne.s32.totalorder %s125, %s128
      %p137 = scmp.eq.s32.totalorder %s33, 7
      %p138 = por %p136, %p137
      %p139 = scmp.ne.s32.totalorder %s128, %s129
      %p140 = scmp.eq.s32.totalorder %s33, 0
      %p141 = por %p139, %p140
      %p142 = scmp.ne.s32.totalorder %s128, %s129
      %p143 = scmp.eq.s32.totalorder %s34, 7
      %p144 = por %p142, %p143
      %p146 = scmp.ne.s32.totalorder %s129, %s145
      %p147 = scmp.eq.s32.totalorder %s34, 0
      %p148 = por %p146, %p147
      %s149 = ssub.s32 %s35, %s54
      %p150 = scmp.eq.s32.totalorder %s149, 0
      %s152 = sadd.s32 %s151, 1
      %s153 = scalar_select %p150, %s151, %s152
      %p156 = pneg %p150
      %p157 = scmp.eq.s32.totalorder %s28, 7
      %p158 = por %p156, %p157
      %p159 = scmp.ne.s32.totalorder %s151, %s154
      %p160 = scmp.eq.s32.totalorder %s28, 0
      %p161 = por %p159, %p160
      %p162 = scmp.ne.s32.totalorder %s151, %s154
      %p163 = scmp.eq.s32.totalorder %s33, 7
      %p164 = por %p162, %p163
      %p165 = scmp.ne.s32.totalorder %s154, %s155
      %p166 = scmp.eq.s32.totalorder %s33, 0
      %p167 = por %p165, %p166
      %p168 = scmp.ne.s32.totalorder %s154, %s155
      %p169 = scmp.eq.s32.totalorder %s34, 7
      %p170 = por %p168, %p169
      %p172 = scmp.ne.s32.totalorder %s155, %s171
      %p173 = scmp.eq.s32.totalorder %s34, 0
      %p174 = por %p172, %p173
      %s175 = ssub.s32 %s35, %s54
      %s176 = ssub.s32 %s37, %s46
      %s177 = sor.u32 %s175, %s176
      %p178 = scmp.eq.s32.totalorder %s177, 0
      %s180 = sadd.s32 %s179, 1
      %s181 = scalar_select %p178, %s179, %s180
      %p184 = pneg %p178
      %p185 = scmp.eq.s32.totalorder %s28, 7
      %p186 = por %p184, %p185
      %p187 = scmp.ne.s32.totalorder %s179, %s182
      %p188 = scmp.eq.s32.totalorder %s28, 0
      %p189 = por %p187, %p188
      %p190 = scmp.ne.s32.totalorder %s179, %s182
      %p191 = scmp.eq.s32.totalorder %s33, 7
      %p192 = por %p190, %p191
      %p193 = scmp.ne.s32.totalorder %s182, %s183
      %p194 = scmp.eq.s32.totalorder %s33, 0
      %p195 = por %p193, %p194
      %p196 = scmp.ne.s32.totalorder %s182, %s183
      %p197 = scmp.eq.s32.totalorder %s34, 7
      %p198 = por %p196, %p197
      %p200 = scmp.ne.s32.totalorder %s183, %s199
      %p201 = scmp.eq.s32.totalorder %s34, 0
      %p202 = por %p200, %p201
      %p203 = scmp.le.s32.totalorder 1, %s28
      %p204 = scmp.lt.s32.totalorder %s28, 9
      %p205 = pnand %p203, %p204
      %p206 = pneg %p205
      // Predicated region
      $region9: #{tpu_custom_call.1} parent=5 // pred_check
        _
      $region10: #{tpu_custom_call.1} parent=5 // pred_check_branch
        %208 = sbr.rel (%p205) target = $region12
      $region11: #{tpu_custom_call.1} parent=5 // pred_region
        %s209 = ssub.s32 %s28, 1
        // Predicated region
        $region13: #{tpu_custom_call.1} parent=11 // pred_check
          %p210 = pneg %p68
        $region14: #{tpu_custom_call.1} parent=11 // pred_check_branch
          %212 = sbr.rel (%p210) target = $region16
        $region15: #{tpu_custom_call.1} parent=11 // pred_region
          %s214 = ssub.s32 2048, 2048
          %215 = vsyncadd [#allocation10], %s214
          %s216 = sshll.u32 [#allocation9], 4
          %s217 = int_to_ptr.vmem [resolvable:$true] %s216
          %222 = dma.hbm_to_vmem [thread:$0]  %s2, 2048, %s217, [#allocation10], 128, 128, 8
        $region16: #{tpu_custom_call.1} parent=11 // pred_fallthru
          _
        // Predicated region
        $region17: #{tpu_custom_call.1} parent=11 // pred_check
          %p223 = pneg %p89
        $region18: #{tpu_custom_call.1} parent=11 // pred_check_branch
          %225 = sbr.rel (%p223) target = $region20
        $region19: #{tpu_custom_call.1} parent=11 // pred_region
          _
        $region20: #{tpu_custom_call.1} parent=11 // pred_fallthru
          _
      $region12: #{tpu_custom_call.1} parent=5 // pred_fallthru
        _
      %p226 = scmp.lt.s32.totalorder %s28, 8
      // Predicated region
      $region21: #{tpu_custom_call.1} parent=5 // pred_check
        %p227 = pneg %p226
      $region22: #{tpu_custom_call.1} parent=5 // pred_check_branch
        %229 = sbr.rel (%p227) target = $region24
      $region23: #{tpu_custom_call.1} parent=5 // pred_region
        // Predicated region
        $region25: #{tpu_custom_call.1} parent=23 // pred_check
          %p230 = pneg %p109
        $region26: #{tpu_custom_call.1} parent=23 // pred_check_branch
          %232 = sbr.rel (%p230) target = $region28
        $region27: #{tpu_custom_call.1} parent=23 // pred_region
          %s233 = sand.u32 %s99, 1
          %s234 = scalar_lea.sflag [#allocation13], %s233
          %s235 = sand.u32 %s99, 1
          %s236 = smul.addr %s235, 256
          %s237 = scalar_lea.vmem [#allocation12], %s236
          %s238 = smul.u32 32, %s37
          %s240 = ssub.s32 4096, 4096
          %241 = vsyncadd %s234, %s240
          %s242 = smul.addr %s238, 128
          %s243 = scalar_lea.hbm %s4, %s242
          %s244 = sshll.u32 %s237, 4
          %s245 = int_to_ptr.vmem [resolvable:$true] %s244
          %250 = dma.hbm_to_vmem [thread:$0]  %s243, 4096, %s245, %s234, 128, 128, 8
        $region28: #{tpu_custom_call.1} parent=23 // pred_fallthru
          _
        // Predicated region
        $region29: #{tpu_custom_call.1} parent=23 // pred_check
          %p251 = pneg %p135
        $region30: #{tpu_custom_call.1} parent=23 // pred_check_branch
          %253 = sbr.rel (%p251) target = $region32
        $region31: #{tpu_custom_call.1} parent=23 // pred_region
          %s254 = smul.u32 2, %s37
          %p255 = scmp.lt.s32.totalorder %s254, 3
          %s256 = scalar_select %p255, %s254, 3
          %s257 = scalar_lea.vmem %s5, %s256
          %s258 = smul.u32 2, %s37
        $region32: #{tpu_custom_call.1} parent=23 // pred_fallthru
          _
      $region24: #{tpu_custom_call.1} parent=5 // pred_fallthru
        _
      %p259 = scmp.le.s32.totalorder 1, %s28
      %p260 = scmp.lt.s32.totalorder %s28, 9
      %p261 = pnand %p259, %p260
      %p262 = pneg %p261
      // Predicated region
      $region33: #{tpu_custom_call.1} parent=5 // pred_check
        _
      $region34: #{tpu_custom_call.1} parent=5 // pred_check_branch
        %264 = sbr.rel (%p261) target = $region36
      $region35: #{tpu_custom_call.1} parent=5 // pred_region
        %s265 = ssub.s32 %s28, 1
        // Predicated region
        $region37: #{tpu_custom_call.1} parent=35 // pred_check
          %p266 = pneg %p68
        $region38: #{tpu_custom_call.1} parent=35 // pred_check_branch
          %268 = sbr.rel (%p266) target = $region40
        $region39: #{tpu_custom_call.1} parent=35 // pred_region
          %269 = dma.done [#allocation10], 2048
        $region40: #{tpu_custom_call.1} parent=35 // pred_fallthru
          _
        %s270 = sand.u32 %s102, 1
        %s271 = scalar_lea.sflag [#allocation13], %s270
        %s272 = sand.u32 %s102, 1
        %s273 = smul.addr %s272, 256
        %s274 = scalar_lea.vmem [#allocation12], %s273
        // Predicated region
        $region41: #{tpu_custom_call.1} parent=35 // pred_check
          %p275 = pneg %p115
        $region42: #{tpu_custom_call.1} parent=35 // pred_check_branch
          %277 = sbr.rel (%p275) target = $region44
        $region43: #{tpu_custom_call.1} parent=35 // pred_region
          %278 = dma.done %s271, 4096
        $region44: #{tpu_custom_call.1} parent=35 // pred_fallthru
          _
        %p279 = pneg %p68
        %p280 = pneg %p65
        %p281 = pneg %p89
        %p282 = pneg %p86
        %s283 = sand.u32 %s102, 1
        %s284 = scalar_lea.sflag [#allocation13], %s283
        %s285 = sand.u32 %s102, 1
        %s286 = smul.addr %s285, 256
        %s287 = scalar_lea.vmem [#allocation12], %s286
        %p288 = pneg %p115
        %p289 = pneg %p112
        %s290 = smul.u32 2, %s40
        %p291 = scmp.lt.s32.totalorder %s290, 3
        %s292 = scalar_select %p291, %s290, 3
        %s293 = scalar_lea.vmem %s5, %s292
        %p294 = pneg %p141
        %p295 = pneg %p138
        %p296 = pneg %p167
        %p297 = pneg %p164
        %s298 = sand.u32 %s154, 1
        %s299 = scalar_lea.sflag [#allocation11], %s298
        %s300 = sand.u32 %s154, 1
        %s301 = smul.addr %s300, 128
        %s302 = scalar_lea.vmem [#allocation14], %s301
        %p303 = pneg %p195
        %p304 = pneg %p192
        %s305 = sand.u32 %s182, 1
        %s306 = scalar_lea.sflag [#allocation16], %s305
        %s307 = sand.u32 %s182, 1
        %s308 = smul.addr %s307, 256
        %s309 = scalar_lea.vmem [#allocation15], %s308
        %s310 = smul.u32 32, %s40
        %s311 = smul.u32 2, %s40
        %p312 = scmp.lt.s32.totalorder %s311, 3
        %s313 = scalar_select %p312, %s311, 3
        %s314 = scalar_lea.vmem %s5, %s313
        %s315 = smul.u32 2, %s40
        %s316 = smul.u32 16, %s38
        %s317 = smul.u32 16, %s38
        %s318 = smul.u32 2, %s40
        %p320 = scmp.eq.s32.totalorder %s39, 0
        %p321 = scmp.eq.s32.totalorder %s40, 0
        %p322 = pnand %p320, %p321
        %p323 = pneg %p322
        // Predicated region
        $region45: #{tpu_custom_call.1} parent=35 // pred_check
          _
        $region46: #{tpu_custom_call.1} parent=35 // pred_check_branch
          %325 = sbr.rel (%p322) target = $region48
        $region47: #{tpu_custom_call.1} parent=35 // pred_region
          %s326 = smul.u32 %s38, 128
          loop: start=0, step=1, limit=128
          $region49: #{tpu_custom_call.1} parent=47 // loop_pre_header
            _
          $region50: #{tpu_custom_call.1} parent=47 // loop_header
            %s328 = sphi 0, %s332
            %p329 = scmp.ge.s32.totalorder %s328, 128
          $region51: #{tpu_custom_call.1} parent=47 // loop_header_branch
            %331 = sbr.rel (%p329) target = $region55
          $region52: #{tpu_custom_call.1} parent=47 // loop_body
            %s333 = sadd.s32 %s326, %s328
            %s334 = sld [smem:[#allocation8 + %s333]]
            %s335 = smul.addr %s334, 16
            %s336 = scalar_lea.hbm %s1, %s335
            %s337 = scalar_lea.vmem [#allocation2], %s328
            // Predicated region
            $region56: #{tpu_custom_call.1} parent=52 // pred_check
              _
            $region57: #{tpu_custom_call.1} parent=52 // pred_check_branch
              %339 = sbr.rel target = $region59
            $region58: #{tpu_custom_call.1} parent=52 // pred_region
              %340 = sst [smem:[#allocation19]] [#allocation18]
              %341 = sst [smem:[#allocation20]] [#allocation17]
            $region59: #{tpu_custom_call.1} parent=52 // pred_fallthru
              _
            %343 = shalt.err (0)
            %s345 = sshll.u32 %s337, 4
            %s346 = int_to_ptr.vmem [resolvable:$true] %s345
            %348 = dma.hbm_to_vmem [thread:$0]  %s336, 16, %s346, [#allocation6]
          $region53: #{tpu_custom_call.1} parent=47 // loop_footer
            %s332 = sadd.s32 1, %s328
          $region54: #{tpu_custom_call.1} parent=47 // loop_footer_branch
            %327 = sbr.rel target = $region50
          $region55: #{tpu_custom_call.1} parent=47 // loop_exit
            _
          loop: start=0, step=1, limit=128
          $region60: #{tpu_custom_call.1} parent=47 // loop_pre_header
            _
          $region61: #{tpu_custom_call.1} parent=47 // loop_header
            %s350 = sphi 0, %s354
            %p351 = scmp.ge.s32.totalorder %s350, 128
          $region62: #{tpu_custom_call.1} parent=47 // loop_header_branch
            %353 = sbr.rel (%p351) target = $region66
          $region63: #{tpu_custom_call.1} parent=47 // loop_body
            %356 = dma.done [#allocation6], 16
          $region64: #{tpu_custom_call.1} parent=47 // loop_footer
            %s354 = sadd.s32 1, %s350
          $region65: #{tpu_custom_call.1} parent=47 // loop_footer_branch
            %349 = sbr.rel target = $region61
          $region66: #{tpu_custom_call.1} parent=47 // loop_exit
            _
          %v357 = vld [vmem:[#allocation2] sm:$0xff]
          %v358 = vld [vmem:[#allocation2 + $0x8] sm:$0xff]
          %v359 = vld [vmem:[#allocation2 + $0x10] sm:$0xff]
          %v360 = vld [vmem:[#allocation2 + $0x18] sm:$0xff]
          %v361 = vld [vmem:[#allocation2 + $0x20] sm:$0xff]
          %v362 = vld [vmem:[#allocation2 + $0x28] sm:$0xff]
          %v363 = vld [vmem:[#allocation2 + $0x30] sm:$0xff]
          %v364 = vld [vmem:[#allocation2 + $0x38] sm:$0xff]
          %v365 = vld [vmem:[#allocation2 + $0x40] sm:$0xff]
          %v366 = vld [vmem:[#allocation2 + $0x48] sm:$0xff]
          %v367 = vld [vmem:[#allocation2 + $0x50] sm:$0xff]
          %v368 = vld [vmem:[#allocation2 + $0x58] sm:$0xff]
          %v369 = vld [vmem:[#allocation2 + $0x60] sm:$0xff]
          %v370 = vld [vmem:[#allocation2 + $0x68] sm:$0xff]
          %v371 = vld [vmem:[#allocation2 + $0x70] sm:$0xff]
          %v372 = vld [vmem:[#allocation2 + $0x78] sm:$0xff]
          %v373 = vld [vmem:[#allocation9] sm:$0xff]
          %v374 = vld [vmem:[#allocation9 + $0x8] sm:$0xff]
          %v375 = vld [vmem:[#allocation9 + $0x10] sm:$0xff]
          %v376 = vld [vmem:[#allocation9 + $0x18] sm:$0xff]
          %v377 = vld [vmem:[#allocation9 + $0x20] sm:$0xff]
          %v378 = vld [vmem:[#allocation9 + $0x28] sm:$0xff]
          %v379 = vld [vmem:[#allocation9 + $0x30] sm:$0xff]
          %v380 = vld [vmem:[#allocation9 + $0x38] sm:$0xff]
          %v381 = vld [vmem:[#allocation9 + $0x40] sm:$0xff]
          %v382 = vld [vmem:[#allocation9 + $0x48] sm:$0xff]
          %v383 = vld [vmem:[#allocation9 + $0x50] sm:$0xff]
          %v384 = vld [vmem:[#allocation9 + $0x58] sm:$0xff]
          %v385 = vld [vmem:[#allocation9 + $0x60] sm:$0xff]
          %v386 = vld [vmem:[#allocation9 + $0x68] sm:$0xff]
          %v387 = vld [vmem:[#allocation9 + $0x70] sm:$0xff]
          %v388 = vld [vmem:[#allocation9 + $0x78] sm:$0xff]
          %v389 = vld [vmem:[%s3] sm:$0x1]
          %v391 = vlaneseq
          %v392 = vshrl.u32 %v391, 7
          %v393 = vsub.s32 0, %v392
          %v394 = vrot.slane %v389, %v393
          %396 = vmatprep.subr.mxu0 0.0
          %397 = vmatpush1.msra.mxu0 %v373
          %398 = vmatprep.subr.mxu0 0.0
          %399 = vmatpush1.msra.mxu0 %v374
          %400 = vmatprep.subr.mxu0 0.0
          %401 = vmatpush1.msra.mxu0 %v375
          %402 = vmatprep.subr.mxu0 0.0
          %403 = vmatpush1.msra.mxu0 %v376
          %404 = vmatprep.subr.mxu0 0.0
          %405 = vmatpush1.msra.mxu0 %v377
          %406 = vmatprep.subr.mxu0 0.0
          %407 = vmatpush1.msra.mxu0 %v378
          %408 = vmatprep.subr.mxu0 0.0
          %409 = vmatpush1.msra.mxu0 %v379
          %410 = vmatprep.subr.mxu0 0.0
          %411 = vmatpush1.msra.mxu0 %v380
          %412 = vmatprep.subr.mxu0 0.0
          %413 = vmatpush1.msra.mxu0 %v381
          %414 = vmatprep.subr.mxu0 0.0
          %415 = vmatpush1.msra.mxu0 %v382
          %416 = vmatprep.subr.mxu0 0.0
          %417 = vmatpush1.msra.mxu0 %v383
          %418 = vmatprep.subr.mxu0 0.0
          %419 = vmatpush1.msra.mxu0 %v384
          %420 = vmatprep.subr.mxu0 0.0
          %421 = vmatpush1.msra.mxu0 %v385
          %422 = vmatprep.subr.mxu0 0.0
          %423 = vmatpush1.msra.mxu0 %v386
          %424 = vmatprep.subr.mxu0 0.0
          %425 = vmatpush1.msra.mxu0 %v387
          %426 = vmatprep.subr.mxu0 0.0
          %427 = vmatpush1.msra.mxu0 %v388
          %428 = vmatprep.subr.mxu0 0.0
          %429 = vmatpush1.msra.mxu0 0.0
          %430 = vmatprep.subr.mxu0 0.0
          %431 = vmatpush1.msra.mxu0 0.0
          %432 = vmatprep.subr.mxu0 0.0
          %433 = vmatpush1.msra.mxu0 0.0
          %434 = vmatprep.subr.mxu0 0.0
          %435 = vmatpush1.msra.mxu0 0.0
          %436 = vmatprep.subr.mxu0 0.0
          %437 = vmatpush1.msra.mxu0 0.0
          %438 = vmatprep.subr.mxu0 0.0
          %439 = vmatpush1.msra.mxu0 0.0
          %440 = vmatprep.subr.mxu0 0.0
          %441 = vmatpush1.msra.mxu0 0.0
          %442 = vmatprep.subr.mxu0 0.0
          %443 = vmatpush1.msra.mxu0 0.0
          %444 = vmatprep.subr.mxu0 0.0
          %445 = vmatpush1.msra.mxu0 0.0
          %446 = vmatprep.subr.mxu0 0.0
          %447 = vmatpush1.msra.mxu0 0.0
          %448 = vmatprep.subr.mxu0 0.0
          %449 = vmatpush1.msra.mxu0 0.0
          %450 = vmatprep.subr.mxu0 0.0
          %451 = vmatpush1.msra.mxu0 0.0
          %452 = vmatprep.subr.mxu0 0.0
          %453 = vmatpush1.msra.mxu0 0.0
          %454 = vmatprep.subr.mxu0 0.0
          %455 = vmatpush1.msra.mxu0 0.0
          %456 = vmatprep.subr.mxu0 0.0
          %457 = vmatpush1.msra.mxu0 0.0
          %458 = vmatprep.subr.mxu0 0.0
          %459 = vmatpush1.msra.mxu0 0.0
          %460 = vmatprep.mubr.f32.mxu0 0.0
          %461 = vmatmul.mubr.f32.gmra.mrb[0].mxu0 %v357
          %v462 = vpop.f32.mrb[0].mxu0
          %v463 = vadd.f32 %v394, %v462
          %v464 = vpop.f32.mrb[0].mxu0
          %465 = vmatprep.mubr.f32.mxu0 0.0
          %466 = vmatmul.mubr.f32.gmra.mrb[0].mxu0 %v358
          %v467 = vpop.f32.mrb[0].mxu0
          %v468 = vadd.f32 %v394, %v467
          %v469 = vpop.f32.mrb[0].mxu0
          %470 = vmatprep.mubr.f32.mxu0 0.0
          %471 = vmatmul.mubr.f32.gmra.mrb[0].mxu0 %v359
          %v472 = vpop.f32.mrb[0].mxu0
          %v473 = vadd.f32 %v394, %v472
          %v474 = vpop.f32.mrb[0].mxu0
          %475 = vmatprep.mubr.f32.mxu0 0.0
          %476 = vmatmul.mubr.f32.gmra.mrb[0].mxu0 %v360
          %v477 = vpop.f32.mrb[0].mxu0
          %v478 = vadd.f32 %v394, %v477
          %v479 = vpop.f32.mrb[0].mxu0
          %480 = vmatprep.mubr.f32.mxu0 0.0
          %481 = vmatmul.mubr.f32.gmra.mrb[0].mxu0 %v361
          %v482 = vpop.f32.mrb[0].mxu0
          %v483 = vadd.f32 %v394, %v482
          %v484 = vpop.f32.mrb[0].mxu0
          %485 = vmatprep.mubr.f32.mxu0 0.0
          %486 = vmatmul.mubr.f32.gmra.mrb[0].mxu0 %v362
          %v487 = vpop.f32.mrb[0].mxu0
          %v488 = vadd.f32 %v394, %v487
          %v489 = vpop.f32.mrb[0].mxu0
          %490 = vmatprep.mubr.f32.mxu0 0.0
          %491 = vmatmul.mubr.f32.gmra.mrb[0].mxu0 %v363
          %v492 = vpop.f32.mrb[0].mxu0
          %v493 = vadd.f32 %v394, %v492
          %v494 = vpop.f32.mrb[0].mxu0
          %495 = vmatprep.mubr.f32.mxu0 0.0
          %496 = vmatmul.mubr.f32.gmra.mrb[0].mxu0 %v364
          %v497 = vpop.f32.mrb[0].mxu0
          %v498 = vadd.f32 %v394, %v497
          %v499 = vpop.f32.mrb[0].mxu0
          %500 = vmatprep.mubr.f32.mxu0 0.0
          %501 = vmatmul.mubr.f32.gmra.mrb[0].mxu0 %v365
          %v502 = vpop.f32.mrb[0].mxu0
          %v503 = vadd.f32 %v394, %v502
          %v504 = vpop.f32.mrb[0].mxu0
          %505 = vmatprep.mubr.f32.mxu0 0.0
          %506 = vmatmul.mubr.f32.gmra.mrb[0].mxu0 %v366
          %v507 = vpop.f32.mrb[0].mxu0
          %v508 = vadd.f32 %v394, %v507
          %v509 = vpop.f32.mrb[0].mxu0
          %510 = vmatprep.mubr.f32.mxu0 0.0
          %511 = vmatmul.mubr.f32.gmra.mrb[0].mxu0 %v367
          %v512 = vpop.f32.mrb[0].mxu0
          %v513 = vadd.f32 %v394, %v512
          %v514 = vpop.f32.mrb[0].mxu0
          %515 = vmatprep.mubr.f32.mxu0 0.0
          %516 = vmatmul.mubr.f32.gmra.mrb[0].mxu0 %v368
          %v517 = vpop.f32.mrb[0].mxu0
          %v518 = vadd.f32 %v394, %v517
          %v519 = vpop.f32.mrb[0].mxu0
          %520 = vmatprep.mubr.f32.mxu0 0.0
          %521 = vmatmul.mubr.f32.gmra.mrb[0].mxu0 %v369
          %v522 = vpop.f32.mrb[0].mxu0
          %v523 = vadd.f32 %v394, %v522
          %v524 = vpop.f32.mrb[0].mxu0
          %525 = vmatprep.mubr.f32.mxu0 0.0
          %526 = vmatmul.mubr.f32.gmra.mrb[0].mxu0 %v370
          %v527 = vpop.f32.mrb[0].mxu0
          %v528 = vadd.f32 %v394, %v527
          %v529 = vpop.f32.mrb[0].mxu0
          %530 = vmatprep.mubr.f32.mxu0 0.0
          %531 = vmatmul.mubr.f32.gmra.mrb[0].mxu0 %v371
          %v532 = vpop.f32.mrb[0].mxu0
          %v533 = vadd.f32 %v394, %v532
          %v534 = vpop.f32.mrb[0].mxu0
          %535 = vmatprep.mubr.f32.mxu0 0.0
          %536 = vmatmul.mubr.f32.gmra.mrb[0].mxu0 %v372
          %v537 = vpop.f32.mrb[0].mxu0
          %v538 = vadd.f32 %v394, %v537
          %v539 = vpop.f32.mrb[0].mxu0
          %540 = vdwg.mxu0
          %v541 = vtanh.pop %v463
          %v542 = vtanh.pop %v468
          %v543 = vtanh.pop %v473
          %v544 = vtanh.pop %v478
          %v545 = vtanh.pop %v483
          %v546 = vtanh.pop %v488
          %v547 = vtanh.pop %v493
          %v548 = vtanh.pop %v498
          %v549 = vtanh.pop %v503
          %v550 = vtanh.pop %v508
          %v551 = vtanh.pop %v513
          %v552 = vtanh.pop %v518
          %v553 = vtanh.pop %v523
          %v554 = vtanh.pop %v528
          %v555 = vtanh.pop %v533
          %v556 = vtanh.pop %v538
          %557 = vst [vmem:[#allocation3] sm:$0xff] %v541
          %558 = vst [vmem:[#allocation3 + $0x8] sm:$0xff] %v542
          %559 = vst [vmem:[#allocation3 + $0x10] sm:$0xff] %v543
          %560 = vst [vmem:[#allocation3 + $0x18] sm:$0xff] %v544
          %561 = vst [vmem:[#allocation3 + $0x20] sm:$0xff] %v545
          %562 = vst [vmem:[#allocation3 + $0x28] sm:$0xff] %v546
          %563 = vst [vmem:[#allocation3 + $0x30] sm:$0xff] %v547
          %564 = vst [vmem:[#allocation3 + $0x38] sm:$0xff] %v548
          %565 = vst [vmem:[#allocation3 + $0x40] sm:$0xff] %v549
          %566 = vst [vmem:[#allocation3 + $0x48] sm:$0xff] %v550
          %567 = vst [vmem:[#allocation3 + $0x50] sm:$0xff] %v551
          %568 = vst [vmem:[#allocation3 + $0x58] sm:$0xff] %v552
          %569 = vst [vmem:[#allocation3 + $0x60] sm:$0xff] %v553
          %570 = vst [vmem:[#allocation3 + $0x68] sm:$0xff] %v554
          %571 = vst [vmem:[#allocation3 + $0x70] sm:$0xff] %v555
          %572 = vst [vmem:[#allocation3 + $0x78] sm:$0xff] %v556
          %573 = vst [vmem:[%s302] sm:$0xff] %v541
          %574 = vst [vmem:[%s302 + $0x8] sm:$0xff] %v542
          %575 = vst [vmem:[%s302 + $0x10] sm:$0xff] %v543
          %576 = vst [vmem:[%s302 + $0x18] sm:$0xff] %v544
          %577 = vst [vmem:[%s302 + $0x20] sm:$0xff] %v545
          %578 = vst [vmem:[%s302 + $0x28] sm:$0xff] %v546
          %579 = vst [vmem:[%s302 + $0x30] sm:$0xff] %v547
          %580 = vst [vmem:[%s302 + $0x38] sm:$0xff] %v548
          %581 = vst [vmem:[%s302 + $0x40] sm:$0xff] %v549
          %582 = vst [vmem:[%s302 + $0x48] sm:$0xff] %v550
          %583 = vst [vmem:[%s302 + $0x50] sm:$0xff] %v551
          %584 = vst [vmem:[%s302 + $0x58] sm:$0xff] %v552
          %585 = vst [vmem:[%s302 + $0x60] sm:$0xff] %v553
          %586 = vst [vmem:[%s302 + $0x68] sm:$0xff] %v554
          %587 = vst [vmem:[%s302 + $0x70] sm:$0xff] %v555
          %588 = vst [vmem:[%s302 + $0x78] sm:$0xff] %v556
          %vm589 = vcmask 7168
          %590 = vst.msk [vmem:[#allocation4] sm:$0xff] %vm589, -inf
          %591 = vst.msk [vmem:[#allocation4 + $0x8] sm:$0xff] %vm589, -inf
          %592 = vst.msk [vmem:[#allocation4 + $0x10] sm:$0xff] %vm589, -inf
          %593 = vst.msk [vmem:[#allocation4 + $0x18] sm:$0xff] %vm589, -inf
          %594 = vst.msk [vmem:[#allocation4 + $0x20] sm:$0xff] %vm589, -inf
          %595 = vst.msk [vmem:[#allocation4 + $0x28] sm:$0xff] %vm589, -inf
          %596 = vst.msk [vmem:[#allocation4 + $0x30] sm:$0xff] %vm589, -inf
          %597 = vst.msk [vmem:[#allocation4 + $0x38] sm:$0xff] %vm589, -inf
          %598 = vst.msk [vmem:[#allocation4 + $0x40] sm:$0xff] %vm589, -inf
          %599 = vst.msk [vmem:[#allocation4 + $0x48] sm:$0xff] %vm589, -inf
          %600 = vst.msk [vmem:[#allocation4 + $0x50] sm:$0xff] %vm589, -inf
          %601 = vst.msk [vmem:[#allocation4 + $0x58] sm:$0xff] %vm589, -inf
          %602 = vst.msk [vmem:[#allocation4 + $0x60] sm:$0xff] %vm589, -inf
          %603 = vst.msk [vmem:[#allocation4 + $0x68] sm:$0xff] %vm589, -inf
          %604 = vst.msk [vmem:[#allocation4 + $0x70] sm:$0xff] %vm589, -inf
          %605 = vst.msk [vmem:[#allocation4 + $0x78] sm:$0xff] %vm589, -inf
          %606 = vst.msk [vmem:[#allocation5] sm:$0xff] %vm589, 0.0
          %607 = vst.msk [vmem:[#allocation5 + $0x8] sm:$0xff] %vm589, 0.0
          %608 = vst.msk [vmem:[#allocation5 + $0x10] sm:$0xff] %vm589, 0.0
          %609 = vst.msk [vmem:[#allocation5 + $0x18] sm:$0xff] %vm589, 0.0
          %610 = vst.msk [vmem:[#allocation5 + $0x20] sm:$0xff] %vm589, 0.0
          %611 = vst.msk [vmem:[#allocation5 + $0x28] sm:$0xff] %vm589, 0.0
          %612 = vst.msk [vmem:[#allocation5 + $0x30] sm:$0xff] %vm589, 0.0
          %613 = vst.msk [vmem:[#allocation5 + $0x38] sm:$0xff] %vm589, 0.0
          %614 = vst.msk [vmem:[#allocation5 + $0x40] sm:$0xff] %vm589, 0.0
          %615 = vst.msk [vmem:[#allocation5 + $0x48] sm:$0xff] %vm589, 0.0
          %616 = vst.msk [vmem:[#allocation5 + $0x50] sm:$0xff] %vm589, 0.0
          %617 = vst.msk [vmem:[#allocation5 + $0x58] sm:$0xff] %vm589, 0.0
          %618 = vst.msk [vmem:[#allocation5 + $0x60] sm:$0xff] %vm589, 0.0
          %619 = vst.msk [vmem:[#allocation5 + $0x68] sm:$0xff] %vm589, 0.0
          %620 = vst.msk [vmem:[#allocation5 + $0x70] sm:$0xff] %vm589, 0.0
          %621 = vst.msk [vmem:[#allocation5 + $0x78] sm:$0xff] %vm589, 0.0
        $region48: #{tpu_custom_call.1} parent=35 // pred_fallthru
          _
        %v622 = vld [vmem:[#allocation3] sm:$0xff]
        %v623 = vld [vmem:[#allocation3 + $0x8] sm:$0xff]
        %v624 = vld [vmem:[#allocation3 + $0x10] sm:$0xff]
        %v625 = vld [vmem:[#allocation3 + $0x18] sm:$0xff]
        %v626 = vld [vmem:[#allocation3 + $0x20] sm:$0xff]
        %v627 = vld [vmem:[#allocation3 + $0x28] sm:$0xff]
        %v628 = vld [vmem:[#allocation3 + $0x30] sm:$0xff]
        %v629 = vld [vmem:[#allocation3 + $0x38] sm:$0xff]
        %v630 = vld [vmem:[#allocation3 + $0x40] sm:$0xff]
        %v631 = vld [vmem:[#allocation3 + $0x48] sm:$0xff]
        %v632 = vld [vmem:[#allocation3 + $0x50] sm:$0xff]
        %v633 = vld [vmem:[#allocation3 + $0x58] sm:$0xff]
        %v634 = vld [vmem:[#allocation3 + $0x60] sm:$0xff]
        %v635 = vld [vmem:[#allocation3 + $0x68] sm:$0xff]
        %v636 = vld [vmem:[#allocation3 + $0x70] sm:$0xff]
        %v637 = vld [vmem:[#allocation3 + $0x78] sm:$0xff]
        %v638 = vpack.c.bf16 %v623, %v622
        %v639 = vpack.c.bf16 %v625, %v624
        %v640 = vpack.c.bf16 %v627, %v626
        %v641 = vpack.c.bf16 %v629, %v628
        %v642 = vpack.c.bf16 %v631, %v630
        %v643 = vpack.c.bf16 %v633, %v632
        %v644 = vpack.c.bf16 %v635, %v634
        %v645 = vpack.c.bf16 %v637, %v636
        %v646 = vld [vmem:[%s274] sm:$0xff]
        %v647 = vld [vmem:[%s274 + $0x8] sm:$0xff]
        %v648 = vld [vmem:[%s274 + $0x10] sm:$0xff]
        %v649 = vld [vmem:[%s274 + $0x18] sm:$0xff]
        %v650 = vld [vmem:[%s274 + $0x20] sm:$0xff]
        %v651 = vld [vmem:[%s274 + $0x28] sm:$0xff]
        %v652 = vld [vmem:[%s274 + $0x30] sm:$0xff]
        %v653 = vld [vmem:[%s274 + $0x38] sm:$0xff]
        %v654 = vld [vmem:[%s274 + $0x40] sm:$0xff]
        %v655 = vld [vmem:[%s274 + $0x48] sm:$0xff]
        %v656 = vld [vmem:[%s274 + $0x50] sm:$0xff]
        %v657 = vld [vmem:[%s274 + $0x58] sm:$0xff]
        %v658 = vld [vmem:[%s274 + $0x60] sm:$0xff]
        %v659 = vld [vmem:[%s274 + $0x68] sm:$0xff]
        %v660 = vld [vmem:[%s274 + $0x70] sm:$0xff]
        %v661 = vld [vmem:[%s274 + $0x78] sm:$0xff]
        %v662 = vld [vmem:[%s274 + $0x80] sm:$0xff]
        %v663 = vld [vmem:[%s274 + $0x88] sm:$0xff]
        %v664 = vld [vmem:[%s274 + $0x90] sm:$0xff]
        %v665 = vld [vmem:[%s274 + $0x98] sm:$0xff]
        %v666 = vld [vmem:[%s274 + $0xa0] sm:$0xff]
        %v667 = vld [vmem:[%s274 + $0xa8] sm:$0xff]
        %v668 = vld [vmem:[%s274 + $0xb0] sm:$0xff]
        %v669 = vld [vmem:[%s274 + $0xb8] sm:$0xff]
        %v670 = vld [vmem:[%s274 + $0xc0] sm:$0xff]
        %v671 = vld [vmem:[%s274 + $0xc8] sm:$0xff]
        %v672 = vld [vmem:[%s274 + $0xd0] sm:$0xff]
        %v673 = vld [vmem:[%s274 + $0xd8] sm:$0xff]
        %v674 = vld [vmem:[%s274 + $0xe0] sm:$0xff]
        %v675 = vld [vmem:[%s274 + $0xe8] sm:$0xff]
        %v676 = vld [vmem:[%s274 + $0xf0] sm:$0xff]
        %v677 = vld [vmem:[%s274 + $0xf8] sm:$0xff]
        %v678 = vpack.c.bf16 %v647, %v646
        %v679 = vpack.c.bf16 %v649, %v648
        %v680 = vpack.c.bf16 %v651, %v650
        %v681 = vpack.c.bf16 %v653, %v652
        %v682 = vpack.c.bf16 %v655, %v654
        %v683 = vpack.c.bf16 %v657, %v656
        %v684 = vpack.c.bf16 %v659, %v658
        %v685 = vpack.c.bf16 %v661, %v660
        %v686 = vpack.c.bf16 %v663, %v662
        %v687 = vpack.c.bf16 %v665, %v664
        %v688 = vpack.c.bf16 %v667, %v666
        %v689 = vpack.c.bf16 %v669, %v668
        %v690 = vpack.c.bf16 %v671, %v670
        %v691 = vpack.c.bf16 %v673, %v672
        %v692 = vpack.c.bf16 %v675, %v674
        %v693 = vpack.c.bf16 %v677, %v676
        %v694 = vld [vmem:[%s314] sm:$0x3]
        %v696 = vlaneseq
        %v697 = vshrl.u32 %v696, 7
        %v698 = vsub.s32 0, %v697
        %v699 = vrot.slane %v694, %v698
        %v700 = vlaneseq
        %v701 = vshrl.u32 %v700, 7
        %v702 = vsub.s32 1, %v701
        %v703 = vrot.slane %v694, %v702
        %706 = vmatprep.subr.bf16.mxu0 0
        %707 = vmatpush1.bf16.xpose.msra.mxu0 %v678
        %708 = vmatprep.subr.bf16.mxu0 0
        %709 = vmatpush1.bf16.xpose.msra.mxu0 %v679
        %710 = vmatprep.subr.bf16.mxu0 0
        %711 = vmatpush1.bf16.xpose.msra.mxu0 %v680
        %712 = vmatprep.subr.bf16.mxu0 0
        %713 = vmatpush1.bf16.xpose.msra.mxu0 %v681
        %714 = vmatprep.subr.bf16.mxu0 0
        %715 = vmatpush1.bf16.xpose.msra.mxu0 %v682
        %716 = vmatprep.subr.bf16.mxu0 0
        %717 = vmatpush1.bf16.xpose.msra.mxu0 %v683
        %718 = vmatprep.subr.bf16.mxu0 0
        %719 = vmatpush1.bf16.xpose.msra.mxu0 %v684
        %720 = vmatprep.subr.bf16.mxu0 0
        %721 = vmatpush1.bf16.xpose.msra.mxu0 %v685
        %722 = vmatprep.subr.bf16.mxu0 0
        %723 = vmatpush1.bf16.xpose.msra.mxu0 %v686
        %724 = vmatprep.subr.bf16.mxu0 0
        %725 = vmatpush1.bf16.xpose.msra.mxu0 %v687
        %726 = vmatprep.subr.bf16.mxu0 0
        %727 = vmatpush1.bf16.xpose.msra.mxu0 %v688
        %728 = vmatprep.subr.bf16.mxu0 0
        %729 = vmatpush1.bf16.xpose.msra.mxu0 %v689
        %730 = vmatprep.subr.bf16.mxu0 0
        %731 = vmatpush1.bf16.xpose.msra.mxu0 %v690
        %732 = vmatprep.subr.bf16.mxu0 0
        %733 = vmatpush1.bf16.xpose.msra.mxu0 %v691
        %734 = vmatprep.subr.bf16.mxu0 0
        %735 = vmatpush1.bf16.xpose.msra.mxu0 %v692
        %736 = vmatprep.subr.bf16.mxu0 0
        %737 = vmatpush1.bf16.xpose.msra.mxu0 %v693
        %738 = vmatprep.mubr.bf16.mxu0 0
        %739 = vmatmul.mubr.bf16.gmra.mrb[0].mxu0 %v638
        %v740 = vpop.f32.mrb[0].mxu0
        %v741 = vadd.f32 %v699, %v740
        %v742 = vpop.f32.mrb[0].mxu0
        %v743 = vadd.f32 %v703, %v742
        %v744 = vpop.f32.mrb[0].mxu0
        %v745 = vadd.f32 %v699, %v744
        %v746 = vpop.f32.mrb[0].mxu0
        %v747 = vadd.f32 %v703, %v746
        %748 = vmatprep.mubr.bf16.mxu0 0
        %749 = vmatmul.mubr.bf16.gmra.mrb[0].mxu0 %v639
        %v750 = vpop.f32.mrb[0].mxu0
        %v751 = vadd.f32 %v699, %v750
        %v752 = vpop.f32.mrb[0].mxu0
        %v753 = vadd.f32 %v703, %v752
        %v754 = vpop.f32.mrb[0].mxu0
        %v755 = vadd.f32 %v699, %v754
        %v756 = vpop.f32.mrb[0].mxu0
        %v757 = vadd.f32 %v703, %v756
        %758 = vmatprep.mubr.bf16.mxu0 0
        %759 = vmatmul.mubr.bf16.gmra.mrb[0].mxu0 %v640
        %v760 = vpop.f32.mrb[0].mxu0
        %v761 = vadd.f32 %v699, %v760
        %v762 = vpop.f32.mrb[0].mxu0
        %v763 = vadd.f32 %v703, %v762
        %v764 = vpop.f32.mrb[0].mxu0
        %v765 = vadd.f32 %v699, %v764
        %v766 = vpop.f32.mrb[0].mxu0
        %v767 = vadd.f32 %v703, %v766
        %768 = vmatprep.mubr.bf16.mxu0 0
        %769 = vmatmul.mubr.bf16.gmra.mrb[0].mxu0 %v641
        %v770 = vpop.f32.mrb[0].mxu0
        %v771 = vadd.f32 %v699, %v770
        %v772 = vpop.f32.mrb[0].mxu0
        %v773 = vadd.f32 %v703, %v772
        %v774 = vpop.f32.mrb[0].mxu0
        %v775 = vadd.f32 %v699, %v774
        %v776 = vpop.f32.mrb[0].mxu0
        %v777 = vadd.f32 %v703, %v776
        %778 = vmatprep.mubr.bf16.mxu0 0
        %779 = vmatmul.mubr.bf16.gmra.mrb[0].mxu0 %v642
        %v780 = vpop.f32.mrb[0].mxu0
        %v781 = vadd.f32 %v699, %v780
        %v782 = vpop.f32.mrb[0].mxu0
        %v783 = vadd.f32 %v703, %v782
        %v784 = vpop.f32.mrb[0].mxu0
        %v785 = vadd.f32 %v699, %v784
        %v786 = vpop.f32.mrb[0].mxu0
        %v787 = vadd.f32 %v703, %v786
        %788 = vmatprep.mubr.bf16.mxu0 0
        %789 = vmatmul.mubr.bf16.gmra.mrb[0].mxu0 %v643
        %v790 = vpop.f32.mrb[0].mxu0
        %v791 = vadd.f32 %v699, %v790
        %v792 = vpop.f32.mrb[0].mxu0
        %v793 = vadd.f32 %v703, %v792
        %v794 = vpop.f32.mrb[0].mxu0
        %v795 = vadd.f32 %v699, %v794
        %v796 = vpop.f32.mrb[0].mxu0
        %v797 = vadd.f32 %v703, %v796
        %798 = vmatprep.mubr.bf16.mxu0 0
        %799 = vmatmul.mubr.bf16.gmra.mrb[0].mxu0 %v644
        %v800 = vpop.f32.mrb[0].mxu0
        %v801 = vadd.f32 %v699, %v800
        %v802 = vpop.f32.mrb[0].mxu0
        %v803 = vadd.f32 %v703, %v802
        %v804 = vpop.f32.mrb[0].mxu0
        %v805 = vadd.f32 %v699, %v804
        %v806 = vpop.f32.mrb[0].mxu0
        %v807 = vadd.f32 %v703, %v806
        %808 = vmatprep.mubr.bf16.mxu0 0
        %809 = vmatmul.mubr.bf16.gmra.mrb[0].mxu0 %v645
        %v810 = vpop.f32.mrb[0].mxu0
        %v811 = vadd.f32 %v699, %v810
        %v812 = vpop.f32.mrb[0].mxu0
        %v813 = vadd.f32 %v703, %v812
        %v814 = vpop.f32.mrb[0].mxu0
        %v815 = vadd.f32 %v699, %v814
        %v816 = vpop.f32.mrb[0].mxu0
        %v817 = vadd.f32 %v703, %v816
        %818 = vdwg.mxu0
        // Predicated region
        $region67: #{tpu_custom_call.1} parent=35 // pred_check
          %p819 = pneg %p320
        $region68: #{tpu_custom_call.1} parent=35 // pred_check_branch
          %821 = sbr.rel (%p819) target = $region70
        $region69: #{tpu_custom_call.1} parent=35 // pred_region
          %v822 = vld [vmem:[#allocation4] sm:$0xff]
          %v823 = vld [vmem:[#allocation4 + $0x8] sm:$0xff]
          %v824 = vld [vmem:[#allocation4 + $0x10] sm:$0xff]
          %v825 = vld [vmem:[#allocation4 + $0x18] sm:$0xff]
          %v826 = vld [vmem:[#allocation4 + $0x20] sm:$0xff]
          %v827 = vld [vmem:[#allocation4 + $0x28] sm:$0xff]
          %v828 = vld [vmem:[#allocation4 + $0x30] sm:$0xff]
          %v829 = vld [vmem:[#allocation4 + $0x38] sm:$0xff]
          %v830 = vld [vmem:[#allocation4 + $0x40] sm:$0xff]
          %v831 = vld [vmem:[#allocation4 + $0x48] sm:$0xff]
          %v832 = vld [vmem:[#allocation4 + $0x50] sm:$0xff]
          %v833 = vld [vmem:[#allocation4 + $0x58] sm:$0xff]
          %v834 = vld [vmem:[#allocation4 + $0x60] sm:$0xff]
          %v835 = vld [vmem:[#allocation4 + $0x68] sm:$0xff]
          %v836 = vld [vmem:[#allocation4 + $0x70] sm:$0xff]
          %v837 = vld [vmem:[#allocation4 + $0x78] sm:$0xff]
          %v838 = vmax.f32 %v741, %v743
          %839 = vmax.xlane.f32.xlu0 %v838
          %v840 = vpop.xlane.xlu0 %839
          %v841 = vmax.f32 %v745, %v747
          %842 = vmax.xlane.f32.xlu0 %v841
          %v843 = vpop.xlane.xlu0 %842
          %v844 = vmax.f32 %v751, %v753
          %845 = vmax.xlane.f32.xlu0 %v844
          %v846 = vpop.xlane.xlu0 %845
          %v847 = vmax.f32 %v755, %v757
          %848 = vmax.xlane.f32.xlu0 %v847
          %v849 = vpop.xlane.xlu0 %848
          %v850 = vmax.f32 %v761, %v763
          %851 = vmax.xlane.f32.xlu0 %v850
          %v852 = vpop.xlane.xlu0 %851
          %v853 = vmax.f32 %v765, %v767
          %854 = vmax.xlane.f32.xlu0 %v853
          %v855 = vpop.xlane.xlu0 %854
          %v856 = vmax.f32 %v771, %v773
          %857 = vmax.xlane.f32.xlu0 %v856
          %v858 = vpop.xlane.xlu0 %857
          %v859 = vmax.f32 %v775, %v777
          %860 = vmax.xlane.f32.xlu0 %v859
          %v861 = vpop.xlane.xlu0 %860
          %v862 = vmax.f32 %v781, %v783
          %863 = vmax.xlane.f32.xlu0 %v862
          %v864 = vpop.xlane.xlu0 %863
          %v865 = vmax.f32 %v785, %v787
          %866 = vmax.xlane.f32.xlu0 %v865
          %v867 = vpop.xlane.xlu0 %866
          %v868 = vmax.f32 %v791, %v793
          %869 = vmax.xlane.f32.xlu0 %v868
          %v870 = vpop.xlane.xlu0 %869
          %v871 = vmax.f32 %v795, %v797
          %872 = vmax.xlane.f32.xlu0 %v871
          %v873 = vpop.xlane.xlu0 %872
          %v874 = vmax.f32 %v801, %v803
          %875 = vmax.xlane.f32.xlu0 %v874
          %v876 = vpop.xlane.xlu0 %875
          %v877 = vmax.f32 %v805, %v807
          %878 = vmax.xlane.f32.xlu0 %v877
          %v879 = vpop.xlane.xlu0 %878
          %v880 = vmax.f32 %v811, %v813
          %881 = vmax.xlane.f32.xlu0 %v880
          %v882 = vpop.xlane.xlu0 %881
          %v883 = vmax.f32 %v815, %v817
          %884 = vmax.xlane.f32.xlu0 %v883
          %v885 = vpop.xlane.xlu0 %884
          %v886 = vmax.f32 %v822, %v840
          %v887 = vmax.f32 %v823, %v843
          %v888 = vmax.f32 %v824, %v846
          %v889 = vmax.f32 %v825, %v849
          %v890 = vmax.f32 %v826, %v852
          %v891 = vmax.f32 %v827, %v855
          %v892 = vmax.f32 %v828, %v858
          %v893 = vmax.f32 %v829, %v861
          %v894 = vmax.f32 %v830, %v864
          %v895 = vmax.f32 %v831, %v867
          %v896 = vmax.f32 %v832, %v870
          %v897 = vmax.f32 %v833, %v873
          %v898 = vmax.f32 %v834, %v876
          %v899 = vmax.f32 %v835, %v879
          %v900 = vmax.f32 %v836, %v882
          %v901 = vmax.f32 %v837, %v885
          %v902 = vld [vmem:[#allocation5] sm:$0xff]
          %v903 = vld [vmem:[#allocation5 + $0x8] sm:$0xff]
          %v904 = vld [vmem:[#allocation5 + $0x10] sm:$0xff]
          %v905 = vld [vmem:[#allocation5 + $0x18] sm:$0xff]
          %v906 = vld [vmem:[#allocation5 + $0x20] sm:$0xff]
          %v907 = vld [vmem:[#allocation5 + $0x28] sm:$0xff]
          %v908 = vld [vmem:[#allocation5 + $0x30] sm:$0xff]
          %v909 = vld [vmem:[#allocation5 + $0x38] sm:$0xff]
          %v910 = vld [vmem:[#allocation5 + $0x40] sm:$0xff]
          %v911 = vld [vmem:[#allocation5 + $0x48] sm:$0xff]
          %v912 = vld [vmem:[#allocation5 + $0x50] sm:$0xff]
          %v913 = vld [vmem:[#allocation5 + $0x58] sm:$0xff]
          %v914 = vld [vmem:[#allocation5 + $0x60] sm:$0xff]
          %v915 = vld [vmem:[#allocation5 + $0x68] sm:$0xff]
          %v916 = vld [vmem:[#allocation5 + $0x70] sm:$0xff]
          %v917 = vld [vmem:[#allocation5 + $0x78] sm:$0xff]
          %v918 = vsub.f32 %v822, %v886
          %v919 = vsub.f32 %v823, %v887
          %v920 = vsub.f32 %v824, %v888
          %v921 = vsub.f32 %v825, %v889
          %v922 = vsub.f32 %v826, %v890
          %v923 = vsub.f32 %v827, %v891
          %v924 = vsub.f32 %v828, %v892
          %v925 = vsub.f32 %v829, %v893
          %v926 = vsub.f32 %v830, %v894
          %v927 = vsub.f32 %v831, %v895
          %v928 = vsub.f32 %v832, %v896
          %v929 = vsub.f32 %v833, %v897
          %v930 = vsub.f32 %v834, %v898
          %v931 = vsub.f32 %v835, %v899
          %v932 = vsub.f32 %v836, %v900
          %v933 = vsub.f32 %v837, %v901
          %v934 = vmul.f32 %v918, 1.442695
          %v935 = vpow.pop %v934
          %v936 = vmul.f32 %v919, 1.442695
          %v937 = vpow.pop %v936
          %v938 = vmul.f32 %v920, 1.442695
          %v939 = vpow.pop %v938
          %v940 = vmul.f32 %v921, 1.442695
          %v941 = vpow.pop %v940
          %v942 = vmul.f32 %v922, 1.442695
          %v943 = vpow.pop %v942
          %v944 = vmul.f32 %v923, 1.442695
          %v945 = vpow.pop %v944
          %v946 = vmul.f32 %v924, 1.442695
          %v947 = vpow.pop %v946
          %v948 = vmul.f32 %v925, 1.442695
          %v949 = vpow.pop %v948
          %v950 = vmul.f32 %v926, 1.442695
          %v951 = vpow.pop %v950
          %v952 = vmul.f32 %v927, 1.442695
          %v953 = vpow.pop %v952
          %v954 = vmul.f32 %v928, 1.442695
          %v955 = vpow.pop %v954
          %v956 = vmul.f32 %v929, 1.442695
          %v957 = vpow.pop %v956
          %v958 = vmul.f32 %v930, 1.442695
          %v959 = vpow.pop %v958
          %v960 = vmul.f32 %v931, 1.442695
          %v961 = vpow.pop %v960
          %v962 = vmul.f32 %v932, 1.442695
          %v963 = vpow.pop %v962
          %v964 = vmul.f32 %v933, 1.442695
          %v965 = vpow.pop %v964
          %v966 = vmul.f32 %v902, %v935
          %v967 = vmul.f32 %v903, %v937
          %v968 = vmul.f32 %v904, %v939
          %v969 = vmul.f32 %v905, %v941
          %v970 = vmul.f32 %v906, %v943
          %v971 = vmul.f32 %v907, %v945
          %v972 = vmul.f32 %v908, %v947
          %v973 = vmul.f32 %v909, %v949
          %v974 = vmul.f32 %v910, %v951
          %v975 = vmul.f32 %v911, %v953
          %v976 = vmul.f32 %v912, %v955
          %v977 = vmul.f32 %v913, %v957
          %v978 = vmul.f32 %v914, %v959
          %v979 = vmul.f32 %v915, %v961
          %v980 = vmul.f32 %v916, %v963
          %v981 = vmul.f32 %v917, %v965
          %983 = vset.pattern.permute.xlu0 0
          %984 = vperm.xlu0 %983, %v886
          %v985 = vpop.permute.xlu0 %984
          %988 = vset.pattern.permute.xlu0 0
          %989 = vperm.xlu0 %988, %v887
          %v990 = vpop.permute.xlu0 %989
          %993 = vset.pattern.permute.xlu0 0
          %994 = vperm.xlu0 %993, %v888
          %v995 = vpop.permute.xlu0 %994
          %998 = vset.pattern.permute.xlu0 0
          %999 = vperm.xlu0 %998, %v889
          %v1000 = vpop.permute.xlu0 %999
          %1003 = vset.pattern.permute.xlu0 0
          %1004 = vperm.xlu0 %1003, %v890
          %v1005 = vpop.permute.xlu0 %1004
          %1008 = vset.pattern.permute.xlu0 0
          %1009 = vperm.xlu0 %1008, %v891
          %v1010 = vpop.permute.xlu0 %1009
          %1013 = vset.pattern.permute.xlu0 0
          %1014 = vperm.xlu0 %1013, %v892
          %v1015 = vpop.permute.xlu0 %1014
          %1018 = vset.pattern.permute.xlu0 0
          %1019 = vperm.xlu0 %1018, %v893
          %v1020 = vpop.permute.xlu0 %1019
          %1023 = vset.pattern.permute.xlu0 0
          %1024 = vperm.xlu0 %1023, %v894
          %v1025 = vpop.permute.xlu0 %1024
          %1028 = vset.pattern.permute.xlu0 0
          %1029 = vperm.xlu0 %1028, %v895
          %v1030 = vpop.permute.xlu0 %1029
          %1033 = vset.pattern.permute.xlu0 0
          %1034 = vperm.xlu0 %1033, %v896
          %v1035 = vpop.permute.xlu0 %1034
          %1038 = vset.pattern.permute.xlu0 0
          %1039 = vperm.xlu0 %1038, %v897
          %v1040 = vpop.permute.xlu0 %1039
          %1043 = vset.pattern.permute.xlu0 0
          %1044 = vperm.xlu0 %1043, %v898
          %v1045 = vpop.permute.xlu0 %1044
          %1048 = vset.pattern.permute.xlu0 0
          %1049 = vperm.xlu0 %1048, %v899
          %v1050 = vpop.permute.xlu0 %1049
          %1053 = vset.pattern.permute.xlu0 0
          %1054 = vperm.xlu0 %1053, %v900
          %v1055 = vpop.permute.xlu0 %1054
          %1058 = vset.pattern.permute.xlu0 0
          %1059 = vperm.xlu0 %1058, %v901
          %v1060 = vpop.permute.xlu0 %1059
          %v1062 = vsub.f32 %v741, %v985
          %v1063 = vsub.f32 %v743, %v985
          %v1064 = vsub.f32 %v745, %v990
          %v1065 = vsub.f32 %v747, %v990
          %v1066 = vsub.f32 %v751, %v995
          %v1067 = vsub.f32 %v753, %v995
          %v1068 = vsub.f32 %v755, %v1000
          %v1069 = vsub.f32 %v757, %v1000
          %v1070 = vsub.f32 %v761, %v1005
          %v1071 = vsub.f32 %v763, %v1005
          %v1072 = vsub.f32 %v765, %v1010
          %v1073 = vsub.f32 %v767, %v1010
          %v1074 = vsub.f32 %v771, %v1015
          %v1075 = vsub.f32 %v773, %v1015
          %v1076 = vsub.f32 %v775, %v1020
          %v1077 = vsub.f32 %v777, %v1020
          %v1078 = vsub.f32 %v781, %v1025
          %v1079 = vsub.f32 %v783, %v1025
          %v1080 = vsub.f32 %v785, %v1030
          %v1081 = vsub.f32 %v787, %v1030
          %v1082 = vsub.f32 %v791, %v1035
          %v1083 = vsub.f32 %v793, %v1035
          %v1084 = vsub.f32 %v795, %v1040
          %v1085 = vsub.f32 %v797, %v1040
          %v1086 = vsub.f32 %v801, %v1045
          %v1087 = vsub.f32 %v803, %v1045
          %v1088 = vsub.f32 %v805, %v1050
          %v1089 = vsub.f32 %v807, %v1050
          %v1090 = vsub.f32 %v811, %v1055
          %v1091 = vsub.f32 %v813, %v1055
          %v1092 = vsub.f32 %v815, %v1060
          %v1093 = vsub.f32 %v817, %v1060
          %v1094 = vmul.f32 %v1062, 1.442695
          %v1095 = vpow.pop %v1094
          %v1096 = vmul.f32 %v1063, 1.442695
          %v1097 = vpow.pop %v1096
          %v1098 = vmul.f32 %v1064, 1.442695
          %v1099 = vpow.pop %v1098
          %v1100 = vmul.f32 %v1065, 1.442695
          %v1101 = vpow.pop %v1100
          %v1102 = vmul.f32 %v1066, 1.442695
          %v1103 = vpow.pop %v1102
          %v1104 = vmul.f32 %v1067, 1.442695
          %v1105 = vpow.pop %v1104
          %v1106 = vmul.f32 %v1068, 1.442695
          %v1107 = vpow.pop %v1106
          %v1108 = vmul.f32 %v1069, 1.442695
          %v1109 = vpow.pop %v1108
          %v1110 = vmul.f32 %v1070, 1.442695
          %v1111 = vpow.pop %v1110
          %v1112 = vmul.f32 %v1071, 1.442695
          %v1113 = vpow.pop %v1112
          %v1114 = vmul.f32 %v1072, 1.442695
          %v1115 = vpow.pop %v1114
          %v1116 = vmul.f32 %v1073, 1.442695
          %v1117 = vpow.pop %v1116
          %v1118 = vmul.f32 %v1074, 1.442695
          %v1119 = vpow.pop %v1118
          %v1120 = vmul.f32 %v1075, 1.442695
          %v1121 = vpow.pop %v1120
          %v1122 = vmul.f32 %v1076, 1.442695
          %v1123 = vpow.pop %v1122
          %v1124 = vmul.f32 %v1077, 1.442695
          %v1125 = vpow.pop %v1124
          %v1126 = vmul.f32 %v1078, 1.442695
          %v1127 = vpow.pop %v1126
          %v1128 = vmul.f32 %v1079, 1.442695
          %v1129 = vpow.pop %v1128
          %v1130 = vmul.f32 %v1080, 1.442695
          %v1131 = vpow.pop %v1130
          %v1132 = vmul.f32 %v1081, 1.442695
          %v1133 = vpow.pop %v1132
          %v1134 = vmul.f32 %v1082, 1.442695
          %v1135 = vpow.pop %v1134
          %v1136 = vmul.f32 %v1083, 1.442695
          %v1137 = vpow.pop %v1136
          %v1138 = vmul.f32 %v1084, 1.442695
          %v1139 = vpow.pop %v1138
          %v1140 = vmul.f32 %v1085, 1.442695
          %v1141 = vpow.pop %v1140
          %v1142 = vmul.f32 %v1086, 1.442695
          %v1143 = vpow.pop %v1142
          %v1144 = vmul.f32 %v1087, 1.442695
          %v1145 = vpow.pop %v1144
          %v1146 = vmul.f32 %v1088, 1.442695
          %v1147 = vpow.pop %v1146
          %v1148 = vmul.f32 %v1089, 1.442695
          %v1149 = vpow.pop %v1148
          %v1150 = vmul.f32 %v1090, 1.442695
          %v1151 = vpow.pop %v1150
          %v1152 = vmul.f32 %v1091, 1.442695
          %v1153 = vpow.pop %v1152
          %v1154 = vmul.f32 %v1092, 1.442695
          %v1155 = vpow.pop %v1154
          %v1156 = vmul.f32 %v1093, 1.442695
          %v1157 = vpow.pop %v1156
          %v1158 = vadd.f32 %v1095, %v1097
          %1159 = vadd.xlane.f32.xlu0 %v1158
          %v1160 = vpop.xlane.xlu0 %1159
          %v1161 = vadd.f32 %v1099, %v1101
          %1162 = vadd.xlane.f32.xlu0 %v1161
          %v1163 = vpop.xlane.xlu0 %1162
          %v1164 = vadd.f32 %v1103, %v1105
          %1165 = vadd.xlane.f32.xlu0 %v1164
          %v1166 = vpop.xlane.xlu0 %1165
          %v1167 = vadd.f32 %v1107, %v1109
          %1168 = vadd.xlane.f32.xlu0 %v1167
          %v1169 = vpop.xlane.xlu0 %1168
          %v1170 = vadd.f32 %v1111, %v1113
          %1171 = vadd.xlane.f32.xlu0 %v1170
          %v1172 = vpop.xlane.xlu0 %1171
          %v1173 = vadd.f32 %v1115, %v1117
          %1174 = vadd.xlane.f32.xlu0 %v1173
          %v1175 = vpop.xlane.xlu0 %1174
          %v1176 = vadd.f32 %v1119, %v1121
          %1177 = vadd.xlane.f32.xlu0 %v1176
          %v1178 = vpop.xlane.xlu0 %1177
          %v1179 = vadd.f32 %v1123, %v1125
          %1180 = vadd.xlane.f32.xlu0 %v1179
          %v1181 = vpop.xlane.xlu0 %1180
          %v1182 = vadd.f32 %v1127, %v1129
          %1183 = vadd.xlane.f32.xlu0 %v1182
          %v1184 = vpop.xlane.xlu0 %1183
          %v1185 = vadd.f32 %v1131, %v1133
          %1186 = vadd.xlane.f32.xlu0 %v1185
          %v1187 = vpop.xlane.xlu0 %1186
          %v1188 = vadd.f32 %v1135, %v1137
          %1189 = vadd.xlane.f32.xlu0 %v1188
          %v1190 = vpop.xlane.xlu0 %1189
          %v1191 = vadd.f32 %v1139, %v1141
          %1192 = vadd.xlane.f32.xlu0 %v1191
          %v1193 = vpop.xlane.xlu0 %1192
          %v1194 = vadd.f32 %v1143, %v1145
          %1195 = vadd.xlane.f32.xlu0 %v1194
          %v1196 = vpop.xlane.xlu0 %1195
          %v1197 = vadd.f32 %v1147, %v1149
          %1198 = vadd.xlane.f32.xlu0 %v1197
          %v1199 = vpop.xlane.xlu0 %1198
          %v1200 = vadd.f32 %v1151, %v1153
          %1201 = vadd.xlane.f32.xlu0 %v1200
          %v1202 = vpop.xlane.xlu0 %1201
          %v1203 = vadd.f32 %v1155, %v1157
          %1204 = vadd.xlane.f32.xlu0 %v1203
          %v1205 = vpop.xlane.xlu0 %1204
          %v1206 = vadd.f32 %v966, %v1160
          %v1207 = vadd.f32 %v967, %v1163
          %v1208 = vadd.f32 %v968, %v1166
          %v1209 = vadd.f32 %v969, %v1169
          %v1210 = vadd.f32 %v970, %v1172
          %v1211 = vadd.f32 %v971, %v1175
          %v1212 = vadd.f32 %v972, %v1178
          %v1213 = vadd.f32 %v973, %v1181
          %v1214 = vadd.f32 %v974, %v1184
          %v1215 = vadd.f32 %v975, %v1187
          %v1216 = vadd.f32 %v976, %v1190
          %v1217 = vadd.f32 %v977, %v1193
          %v1218 = vadd.f32 %v978, %v1196
          %v1219 = vadd.f32 %v979, %v1199
          %v1220 = vadd.f32 %v980, %v1202
          %v1221 = vadd.f32 %v981, %v1205
          %vm1222 = vcmask 7168
          %1223 = vst.msk [vmem:[#allocation5] sm:$0xff] %vm1222, %v1206
          %1224 = vst.msk [vmem:[#allocation5 + $0x8] sm:$0xff] %vm1222, %v1207
          %1225 = vst.msk [vmem:[#allocation5 + $0x10] sm:$0xff] %vm1222, %v1208
          %1226 = vst.msk [vmem:[#allocation5 + $0x18] sm:$0xff] %vm1222, %v1209
          %1227 = vst.msk [vmem:[#allocation5 + $0x20] sm:$0xff] %vm1222, %v1210
          %1228 = vst.msk [vmem:[#allocation5 + $0x28] sm:$0xff] %vm1222, %v1211
          %1229 = vst.msk [vmem:[#allocation5 + $0x30] sm:$0xff] %vm1222, %v1212
          %1230 = vst.msk [vmem:[#allocation5 + $0x38] sm:$0xff] %vm1222, %v1213
          %1231 = vst.msk [vmem:[#allocation5 + $0x40] sm:$0xff] %vm1222, %v1214
          %1232 = vst.msk [vmem:[#allocation5 + $0x48] sm:$0xff] %vm1222, %v1215
          %1233 = vst.msk [vmem:[#allocation5 + $0x50] sm:$0xff] %vm1222, %v1216
          %1234 = vst.msk [vmem:[#allocation5 + $0x58] sm:$0xff] %vm1222, %v1217
          %1235 = vst.msk [vmem:[#allocation5 + $0x60] sm:$0xff] %vm1222, %v1218
          %1236 = vst.msk [vmem:[#allocation5 + $0x68] sm:$0xff] %vm1222, %v1219
          %1237 = vst.msk [vmem:[#allocation5 + $0x70] sm:$0xff] %vm1222, %v1220
          %1238 = vst.msk [vmem:[#allocation5 + $0x78] sm:$0xff] %vm1222, %v1221
          %1239 = vst.msk [vmem:[#allocation4] sm:$0xff] %vm1222, %v886
          %1240 = vst.msk [vmem:[#allocation4 + $0x8] sm:$0xff] %vm1222, %v887
          %1241 = vst.msk [vmem:[#allocation4 + $0x10] sm:$0xff] %vm1222, %v888
          %1242 = vst.msk [vmem:[#allocation4 + $0x18] sm:$0xff] %vm1222, %v889
          %1243 = vst.msk [vmem:[#allocation4 + $0x20] sm:$0xff] %vm1222, %v890
          %1244 = vst.msk [vmem:[#allocation4 + $0x28] sm:$0xff] %vm1222, %v891
          %1245 = vst.msk [vmem:[#allocation4 + $0x30] sm:$0xff] %vm1222, %v892
          %1246 = vst.msk [vmem:[#allocation4 + $0x38] sm:$0xff] %vm1222, %v893
          %1247 = vst.msk [vmem:[#allocation4 + $0x40] sm:$0xff] %vm1222, %v894
          %1248 = vst.msk [vmem:[#allocation4 + $0x48] sm:$0xff] %vm1222, %v895
          %1249 = vst.msk [vmem:[#allocation4 + $0x50] sm:$0xff] %vm1222, %v896
          %1250 = vst.msk [vmem:[#allocation4 + $0x58] sm:$0xff] %vm1222, %v897
          %1251 = vst.msk [vmem:[#allocation4 + $0x60] sm:$0xff] %vm1222, %v898
          %1252 = vst.msk [vmem:[#allocation4 + $0x68] sm:$0xff] %vm1222, %v899
          %1253 = vst.msk [vmem:[#allocation4 + $0x70] sm:$0xff] %vm1222, %v900
          %1254 = vst.msk [vmem:[#allocation4 + $0x78] sm:$0xff] %vm1222, %v901
        $region70: #{tpu_custom_call.1} parent=35 // pred_fallthru
          _
        %p1255 = scmp.eq.s32.totalorder %s39, 1
        // Predicated region
        $region71: #{tpu_custom_call.1} parent=35 // pred_check
          %p1256 = pneg %p1255
        $region72: #{tpu_custom_call.1} parent=35 // pred_check_branch
          %1258 = sbr.rel (%p1256) target = $region74
        $region73: #{tpu_custom_call.1} parent=35 // pred_region
          %v1259 = vld [vmem:[#allocation4] sm:$0xff]
          %v1260 = vld [vmem:[#allocation4 + $0x8] sm:$0xff]
          %v1261 = vld [vmem:[#allocation4 + $0x10] sm:$0xff]
          %v1262 = vld [vmem:[#allocation4 + $0x18] sm:$0xff]
          %v1263 = vld [vmem:[#allocation4 + $0x20] sm:$0xff]
          %v1264 = vld [vmem:[#allocation4 + $0x28] sm:$0xff]
          %v1265 = vld [vmem:[#allocation4 + $0x30] sm:$0xff]
          %v1266 = vld [vmem:[#allocation4 + $0x38] sm:$0xff]
          %v1267 = vld [vmem:[#allocation4 + $0x40] sm:$0xff]
          %v1268 = vld [vmem:[#allocation4 + $0x48] sm:$0xff]
          %v1269 = vld [vmem:[#allocation4 + $0x50] sm:$0xff]
          %v1270 = vld [vmem:[#allocation4 + $0x58] sm:$0xff]
          %v1271 = vld [vmem:[#allocation4 + $0x60] sm:$0xff]
          %v1272 = vld [vmem:[#allocation4 + $0x68] sm:$0xff]
          %v1273 = vld [vmem:[#allocation4 + $0x70] sm:$0xff]
          %v1274 = vld [vmem:[#allocation4 + $0x78] sm:$0xff]
          %v1275 = vld [vmem:[#allocation5] sm:$0xff]
          %v1276 = vld [vmem:[#allocation5 + $0x8] sm:$0xff]
          %v1277 = vld [vmem:[#allocation5 + $0x10] sm:$0xff]
          %v1278 = vld [vmem:[#allocation5 + $0x18] sm:$0xff]
          %v1279 = vld [vmem:[#allocation5 + $0x20] sm:$0xff]
          %v1280 = vld [vmem:[#allocation5 + $0x28] sm:$0xff]
          %v1281 = vld [vmem:[#allocation5 + $0x30] sm:$0xff]
          %v1282 = vld [vmem:[#allocation5 + $0x38] sm:$0xff]
          %v1283 = vld [vmem:[#allocation5 + $0x40] sm:$0xff]
          %v1284 = vld [vmem:[#allocation5 + $0x48] sm:$0xff]
          %v1285 = vld [vmem:[#allocation5 + $0x50] sm:$0xff]
          %v1286 = vld [vmem:[#allocation5 + $0x58] sm:$0xff]
          %v1287 = vld [vmem:[#allocation5 + $0x60] sm:$0xff]
          %v1288 = vld [vmem:[#allocation5 + $0x68] sm:$0xff]
          %v1289 = vld [vmem:[#allocation5 + $0x70] sm:$0xff]
          %v1290 = vld [vmem:[#allocation5 + $0x78] sm:$0xff]
          %v1291 = vlog2.pop %v1275
          %v1292 = vmul.f32 %v1291, 0.6931472
          %v1293 = vlog2.pop %v1276
          %v1294 = vmul.f32 %v1293, 0.6931472
          %v1295 = vlog2.pop %v1277
          %v1296 = vmul.f32 %v1295, 0.6931472
          %v1297 = vlog2.pop %v1278
          %v1298 = vmul.f32 %v1297, 0.6931472
          %v1299 = vlog2.pop %v1279
          %v1300 = vmul.f32 %v1299, 0.6931472
          %v1301 = vlog2.pop %v1280
          %v1302 = vmul.f32 %v1301, 0.6931472
          %v1303 = vlog2.pop %v1281
          %v1304 = vmul.f32 %v1303, 0.6931472
          %v1305 = vlog2.pop %v1282
          %v1306 = vmul.f32 %v1305, 0.6931472
          %v1307 = vlog2.pop %v1283
          %v1308 = vmul.f32 %v1307, 0.6931472
          %v1309 = vlog2.pop %v1284
          %v1310 = vmul.f32 %v1309, 0.6931472
          %v1311 = vlog2.pop %v1285
          %v1312 = vmul.f32 %v1311, 0.6931472
          %v1313 = vlog2.pop %v1286
          %v1314 = vmul.f32 %v1313, 0.6931472
          %v1315 = vlog2.pop %v1287
          %v1316 = vmul.f32 %v1315, 0.6931472
          %v1317 = vlog2.pop %v1288
          %v1318 = vmul.f32 %v1317, 0.6931472
          %v1319 = vlog2.pop %v1289
          %v1320 = vmul.f32 %v1319, 0.6931472
          %v1321 = vlog2.pop %v1290
          %v1322 = vmul.f32 %v1321, 0.6931472
          %v1323 = vadd.f32 %v1259, %v1292
          %v1324 = vadd.f32 %v1260, %v1294
          %v1325 = vadd.f32 %v1261, %v1296
          %v1326 = vadd.f32 %v1262, %v1298
          %v1327 = vadd.f32 %v1263, %v1300
          %v1328 = vadd.f32 %v1264, %v1302
          %v1329 = vadd.f32 %v1265, %v1304
          %v1330 = vadd.f32 %v1266, %v1306
          %v1331 = vadd.f32 %v1267, %v1308
          %v1332 = vadd.f32 %v1268, %v1310
          %v1333 = vadd.f32 %v1269, %v1312
          %v1334 = vadd.f32 %v1270, %v1314
          %v1335 = vadd.f32 %v1271, %v1316
          %v1336 = vadd.f32 %v1272, %v1318
          %v1337 = vadd.f32 %v1273, %v1320
          %v1338 = vadd.f32 %v1274, %v1322
          %1340 = vset.pattern.permute.xlu0 0
          %1341 = vperm.xlu0 %1340, %v1323
          %v1342 = vpop.permute.xlu0 %1341
          %1345 = vset.pattern.permute.xlu0 0
          %1346 = vperm.xlu0 %1345, %v1324
          %v1347 = vpop.permute.xlu0 %1346
          %1350 = vset.pattern.permute.xlu0 0
          %1351 = vperm.xlu0 %1350, %v1325
          %v1352 = vpop.permute.xlu0 %1351
          %1355 = vset.pattern.permute.xlu0 0
          %1356 = vperm.xlu0 %1355, %v1326
          %v1357 = vpop.permute.xlu0 %1356
          %1360 = vset.pattern.permute.xlu0 0
          %1361 = vperm.xlu0 %1360, %v1327
          %v1362 = vpop.permute.xlu0 %1361
          %1365 = vset.pattern.permute.xlu0 0
          %1366 = vperm.xlu0 %1365, %v1328
          %v1367 = vpop.permute.xlu0 %1366
          %1370 = vset.pattern.permute.xlu0 0
          %1371 = vperm.xlu0 %1370, %v1329
          %v1372 = vpop.permute.xlu0 %1371
          %1375 = vset.pattern.permute.xlu0 0
          %1376 = vperm.xlu0 %1375, %v1330
          %v1377 = vpop.permute.xlu0 %1376
          %1380 = vset.pattern.permute.xlu0 0
          %1381 = vperm.xlu0 %1380, %v1331
          %v1382 = vpop.permute.xlu0 %1381
          %1385 = vset.pattern.permute.xlu0 0
          %1386 = vperm.xlu0 %1385, %v1332
          %v1387 = vpop.permute.xlu0 %1386
          %1390 = vset.pattern.permute.xlu0 0
          %1391 = vperm.xlu0 %1390, %v1333
          %v1392 = vpop.permute.xlu0 %1391
          %1395 = vset.pattern.permute.xlu0 0
          %1396 = vperm.xlu0 %1395, %v1334
          %v1397 = vpop.permute.xlu0 %1396
          %1400 = vset.pattern.permute.xlu0 0
          %1401 = vperm.xlu0 %1400, %v1335
          %v1402 = vpop.permute.xlu0 %1401
          %1405 = vset.pattern.permute.xlu0 0
          %1406 = vperm.xlu0 %1405, %v1336
          %v1407 = vpop.permute.xlu0 %1406
          %1410 = vset.pattern.permute.xlu0 0
          %1411 = vperm.xlu0 %1410, %v1337
          %v1412 = vpop.permute.xlu0 %1411
          %1415 = vset.pattern.permute.xlu0 0
          %1416 = vperm.xlu0 %1415, %v1338
          %v1417 = vpop.permute.xlu0 %1416
          %v1419 = vsub.f32 %v741, %v1342
          %v1420 = vsub.f32 %v743, %v1342
          %v1421 = vsub.f32 %v745, %v1347
          %v1422 = vsub.f32 %v747, %v1347
          %v1423 = vsub.f32 %v751, %v1352
          %v1424 = vsub.f32 %v753, %v1352
          %v1425 = vsub.f32 %v755, %v1357
          %v1426 = vsub.f32 %v757, %v1357
          %v1427 = vsub.f32 %v761, %v1362
          %v1428 = vsub.f32 %v763, %v1362
          %v1429 = vsub.f32 %v765, %v1367
          %v1430 = vsub.f32 %v767, %v1367
          %v1431 = vsub.f32 %v771, %v1372
          %v1432 = vsub.f32 %v773, %v1372
          %v1433 = vsub.f32 %v775, %v1377
          %v1434 = vsub.f32 %v777, %v1377
          %v1435 = vsub.f32 %v781, %v1382
          %v1436 = vsub.f32 %v783, %v1382
          %v1437 = vsub.f32 %v785, %v1387
          %v1438 = vsub.f32 %v787, %v1387
          %v1439 = vsub.f32 %v791, %v1392
          %v1440 = vsub.f32 %v793, %v1392
          %v1441 = vsub.f32 %v795, %v1397
          %v1442 = vsub.f32 %v797, %v1397
          %v1443 = vsub.f32 %v801, %v1402
          %v1444 = vsub.f32 %v803, %v1402
          %v1445 = vsub.f32 %v805, %v1407
          %v1446 = vsub.f32 %v807, %v1407
          %v1447 = vsub.f32 %v811, %v1412
          %v1448 = vsub.f32 %v813, %v1412
          %v1449 = vsub.f32 %v815, %v1417
          %v1450 = vsub.f32 %v817, %v1417
          %1451 = vst [vmem:[%s309] sm:$0xff] %v1419
          %1452 = vst [vmem:[%s309 + $0x8] sm:$0xff] %v1420
          %1453 = vst [vmem:[%s309 + $0x10] sm:$0xff] %v1421
          %1454 = vst [vmem:[%s309 + $0x18] sm:$0xff] %v1422
          %1455 = vst [vmem:[%s309 + $0x20] sm:$0xff] %v1423
          %1456 = vst [vmem:[%s309 + $0x28] sm:$0xff] %v1424
          %1457 = vst [vmem:[%s309 + $0x30] sm:$0xff] %v1425
          %1458 = vst [vmem:[%s309 + $0x38] sm:$0xff] %v1426
          %1459 = vst [vmem:[%s309 + $0x40] sm:$0xff] %v1427
          %1460 = vst [vmem:[%s309 + $0x48] sm:$0xff] %v1428
          %1461 = vst [vmem:[%s309 + $0x50] sm:$0xff] %v1429
          %1462 = vst [vmem:[%s309 + $0x58] sm:$0xff] %v1430
          %1463 = vst [vmem:[%s309 + $0x60] sm:$0xff] %v1431
          %1464 = vst [vmem:[%s309 + $0x68] sm:$0xff] %v1432
          %1465 = vst [vmem:[%s309 + $0x70] sm:$0xff] %v1433
          %1466 = vst [vmem:[%s309 + $0x78] sm:$0xff] %v1434
          %1467 = vst [vmem:[%s309 + $0x80] sm:$0xff] %v1435
          %1468 = vst [vmem:[%s309 + $0x88] sm:$0xff] %v1436
          %1469 = vst [vmem:[%s309 + $0x90] sm:$0xff] %v1437
          %1470 = vst [vmem:[%s309 + $0x98] sm:$0xff] %v1438
          %1471 = vst [vmem:[%s309 + $0xa0] sm:$0xff] %v1439
          %1472 = vst [vmem:[%s309 + $0xa8] sm:$0xff] %v1440
          %1473 = vst [vmem:[%s309 + $0xb0] sm:$0xff] %v1441
          %1474 = vst [vmem:[%s309 + $0xb8] sm:$0xff] %v1442
          %1475 = vst [vmem:[%s309 + $0xc0] sm:$0xff] %v1443
          %1476 = vst [vmem:[%s309 + $0xc8] sm:$0xff] %v1444
          %1477 = vst [vmem:[%s309 + $0xd0] sm:$0xff] %v1445
          %1478 = vst [vmem:[%s309 + $0xd8] sm:$0xff] %v1446
          %1479 = vst [vmem:[%s309 + $0xe0] sm:$0xff] %v1447
          %1480 = vst [vmem:[%s309 + $0xe8] sm:$0xff] %v1448
          %1481 = vst [vmem:[%s309 + $0xf0] sm:$0xff] %v1449
          %1482 = vst [vmem:[%s309 + $0xf8] sm:$0xff] %v1450
        $region74: #{tpu_custom_call.1} parent=35 // pred_fallthru
          _
        %s1483 = sand.u32 %s154, 1
        %s1484 = scalar_lea.sflag [#allocation11], %s1483
        %s1485 = sand.u32 %s154, 1
        %s1486 = smul.addr %s1485, 128
        %s1487 = scalar_lea.vmem [#allocation14], %s1486
        %s1488 = sand.u32 %s182, 1
        %s1489 = scalar_lea.sflag [#allocation16], %s1488
        %s1490 = sand.u32 %s182, 1
        %s1491 = smul.addr %s1490, 256
        %s1492 = scalar_lea.vmem [#allocation15], %s1491
        // Predicated region
        $region75: #{tpu_custom_call.1} parent=35 // pred_check
          %p1493 = pneg %p164
        $region76: #{tpu_custom_call.1} parent=35 // pred_check_branch
          %1495 = sbr.rel (%p1493) target = $region78
        $region77: #{tpu_custom_call.1} parent=35 // pred_region
          %s1496 = smul.u32 16, %s38
          %s1498 = ssub.s32 2048, 2048
          %1499 = vsyncadd %s1484, %s1498
          %s1500 = smul.addr %s1496, 128
          %s1501 = scalar_lea.hbm %s6, %s1500
          %s1502 = sshll.u32 %s1487, 4
          %s1503 = int_to_ptr.vmem [resolvable:$true] %s1502
          %1508 = dma.vmem_to_hbm [thread:$0]  %s1503, 2048, %s1501, %s1484, 128, 128, 8
        $region78: #{tpu_custom_call.1} parent=35 // pred_fallthru
          _
        // Predicated region
        $region79: #{tpu_custom_call.1} parent=35 // pred_check
          %p1509 = pneg %p192
        $region80: #{tpu_custom_call.1} parent=35 // pred_check_branch
          %1511 = sbr.rel (%p1509) target = $region82
        $region81: #{tpu_custom_call.1} parent=35 // pred_region
          %s1512 = smul.u32 16, %s38
          %s1513 = smul.u32 2, %s40
          %s1515 = ssub.s32 4096, 4096
          %1516 = vsyncadd %s1489, %s1515
          %s1517 = smul.addr %s1512, 4
          %s1518 = sadd.s32 %s1513, %s1517
          %s1519 = smul.addr %s1518, 128
          %s1520 = scalar_lea.hbm %s7, %s1519
          %s1521 = sshll.u32 %s1492, 4
          %s1522 = int_to_ptr.vmem [resolvable:$true] %s1521
          %1527 = dma.vmem_to_hbm [thread:$0]  %s1522, 4096, %s1520, %s1489, 256, 512, 16
        $region82: #{tpu_custom_call.1} parent=35 // pred_fallthru
          _
      $region36: #{tpu_custom_call.1} parent=5 // pred_fallthru
        _
      %p1528 = scmp.le.s32.totalorder 2, %s28
      // Predicated region
      $region83: #{tpu_custom_call.1} parent=5 // pred_check
        %p1529 = pneg %p1528
      $region84: #{tpu_custom_call.1} parent=5 // pred_check_branch
        %1531 = sbr.rel (%p1529) target = $region86
      $region85: #{tpu_custom_call.1} parent=5 // pred_region
        %s1532 = ssub.s32 %s28, 2
        // Predicated region
        $region87: #{tpu_custom_call.1} parent=85 // pred_check
          %p1533 = pneg %p170
        $region88: #{tpu_custom_call.1} parent=85 // pred_check_branch
          %1535 = sbr.rel (%p1533) target = $region90
        $region89: #{tpu_custom_call.1} parent=85 // pred_region
          %s1536 = sand.u32 %s155, 1
          %s1537 = scalar_lea.sflag [#allocation11], %s1536
          %s1538 = sand.u32 %s155, 1
          %s1539 = smul.addr %s1538, 128
          %s1540 = scalar_lea.vmem [#allocation14], %s1539
          %1541 = dma.done %s1537, 2048
        $region90: #{tpu_custom_call.1} parent=85 // pred_fallthru
          _
        // Predicated region
        $region91: #{tpu_custom_call.1} parent=85 // pred_check
          %p1542 = pneg %p198
        $region92: #{tpu_custom_call.1} parent=85 // pred_check_branch
          %1544 = sbr.rel (%p1542) target = $region94
        $region93: #{tpu_custom_call.1} parent=85 // pred_region
          %s1545 = sand.u32 %s183, 1
          %s1546 = scalar_lea.sflag [#allocation16], %s1545
          %s1547 = sand.u32 %s183, 1
          %s1548 = smul.addr %s1547, 256
          %s1549 = scalar_lea.vmem [#allocation15], %s1548
          %1550 = dma.done %s1546, 4096
        $region94: #{tpu_custom_call.1} parent=85 // pred_fallthru
          _
      $region86: #{tpu_custom_call.1} parent=5 // pred_fallthru
        _
    $region6: #{tpu_custom_call.1} parent=1 // loop_footer
      %s32 = sadd.s32 1, %s28
    $region7: #{tpu_custom_call.1} parent=1 // loop_footer_branch
      %27 = sbr.rel target = $region3
    $region8: #{tpu_custom_call.1} parent=1 // loop_exit
      _
    %1551 = vsyncpa [#allocation10], 1
    %s1552 = scalar_lea.sflag [#allocation10], 1
    %1553 = vsyncpa %s1552, 1
    %1554 = vsyncpa [#allocation13], 1
    %s1555 = scalar_lea.sflag [#allocation13], 1
    %1556 = vsyncpa %s1555, 1
    %1557 = vsyncpa [#allocation11], 1
    %s1558 = scalar_lea.sflag [#allocation11], 1
    %1559 = vsyncpa %s1558, 1
    %1560 = vsyncpa [#allocation16], 1
    %s1561 = scalar_lea.sflag [#allocation16], 1
    %1562 = vsyncpa %s1561, 1
  %1563 = vsyncmov [#allocation6]
  %s1564 = vpop.sfrf %1563
  %p1565 = scmp.eq.s32.totalorder %s1564, 0
  %p1566 = pneg %p1565
  %1568 = shalt.err (%p1566)

</llo_original>
